<compile_context>
chip_gen: v6e
topology: v6e:2x2x1
jax: 0.10.0
libtpu: 0.0.40
codegen_flags: <defaults>
</compile_context>

<pallas_src>
import functools

import jax
import jax.numpy as jnp
import numpy as np
from jax.experimental import pallas as pl
from jax.experimental.pallas import tpu as pltpu


def _round_up(x, m):
    return ((x + m - 1) // m) * m


def _pick_batch_tile(n, l, c_pad_max, act_budget_bytes=16 << 20):
    """Largest divisor of n whose NB*L rows of live f32 activations fit the
    VMEM activation budget, while keeping >=2 grid steps (v7x megacore)."""
    bytes_per_row = 12 * c_pad_max * 4          # generous live-value bound
    max_rows = max(l, act_budget_bytes // bytes_per_row)
    nb = 1
    for d in range(1, n + 1):
        if n % d == 0 and d * l <= max_rows:
            nb = d
    if nb == n and n > 1:                       # keep at least 2 grid steps
        nb = max(d for d in range(1, n) if n % d == 0)
    return nb


# ------------------------- one-time parameter packing -------------------------
def pack_tcn_params(params, *, input_size, num_channels, kernel_size,
                    output_size, compute_dtype=jnp.bfloat16):
    """Transpose/pad/fuse all weights once, outside the forward path."""
    K = kernel_size
    ops = []
    cfg = []
    cin = input_size
    cpi = _round_up(cin, 128)
    for i, cout in enumerate(num_channels):
        blk = params["blocks"][i]
        cpo = _round_up(cout, 128)
        has_ds = (cin != cout)
        dilation = 2 ** i

        # PyTorch Conv1d weight (Cout, Cin, K) -> per-tap (K, Cin_p, Cout_p)
        w1 = jnp.transpose(blk["w1"], (2, 1, 0))
        w1 = jnp.pad(w1, ((0, 0), (0, cpi - cin), (0, cpo - cout)))
        if K > 1:
            ops.append(w1[:K - 1].astype(compute_dtype))          # (K-1, cpi, cpo)
        tail = w1[K - 1]                                          # unshifted tap
        b1 = jnp.pad(blk["b1"], (0, cpo - cout))
        if has_ds:
            wd = jnp.pad(blk["wd"][:, :, 0].T,
                         ((0, cpi - cin), (0, cpo - cout)))
            tail = jnp.concatenate([tail, wd], axis=1)            # (cpi, 2*cpo)
            bd = jnp.pad(blk["bd"], (0, cpo - cout))
            b1c = jnp.concatenate([b1, bd])                       # (2*cpo,)
        else:
            b1c = b1
        ops.append(tail.astype(compute_dtype))
        ops.append(b1c.reshape(1, -1).astype(jnp.float32))

        w2 = jnp.transpose(blk["w2"], (2, 1, 0))
        w2 = jnp.pad(w2, ((0, 0), (0, cpo - cout), (0, cpo - cout)))
        ops.append(w2.astype(compute_dtype))                      # (K, cpo, cpo)
        ops.append(jnp.pad(blk["b2"], (0, cpo - cout))
                   .reshape(1, cpo).astype(jnp.float32))

        cfg.append(dict(dilation=dilation, has_ds=has_ds,
                        cin_p=cpi, cout_p=cpo))
        cin, cpi = cout, cpo

    # decoder: Linear(c_last, 128) -> ReLU -> Linear(128, output_size) -> Sigmoid
    hidden = params["dec_w1"].shape[0]
    hp = _round_up(hidden, 128)
    op = _round_up(output_size, 128)
    c_last = num_channels[-1]
    cpl = _round_up(c_last, 128)
    ops.append(jnp.pad(params["dec_w1"].T,
                       ((0, cpl - c_last), (0, hp - hidden))).astype(compute_dtype))
    ops.append(jnp.pad(params["dec_b1"], (0, hp - hidden))
               .reshape(1, hp).astype(jnp.float32))
    ops.append(jnp.pad(params["dec_w2"].T,
                       ((0, hp - hidden), (0, op - output_size))).astype(compute_dtype))
    ops.append(jnp.pad(params["dec_b2"], (0, op - output_size))
               .reshape(1, op).astype(jnp.float32))

    meta = dict(K=K, cfg=tuple(cfg), out_p=op, output_size=output_size,
                compute_dtype=compute_dtype)
    return ops, meta


# ------------------------------ fused kernel ----------------------------------
def _tcn_fused_kernel(*refs, cfg, K, compute_dtype):
    x_ref = refs[0]
    o_ref = refs[-1]
    wrefs = refs[1:-1]
    NB, L, cin_true = x_ref.shape
    cdtype = compute_dtype
    f32 = jnp.float32
    M = NB * L

    # raw-width input -> lane-pad to the first block's padded channel width
    x = x_ref[...].astype(cdtype)
    cpi0 = cfg[0]["cin_p"]
    if cin_true < cpi0:
        x = jnp.concatenate(
            [x, jnp.zeros((NB, L, cpi0 - cin_true), cdtype)], axis=-1)

    def causal_taps(v, dilation):
        # tap k reads v[t - (K-1-k)*dilation], zero for t < 0 (causal conv)
        pad = (K - 1) * dilation
        if pad == 0:
            return [v] * K
        vp = jnp.concatenate(
            [jnp.zeros((NB, pad, v.shape[-1]), v.dtype), v], axis=1)
        return [vp[:, k * dilation:k * dilation + L, :] for k in range(K)]

    idx = 0
    h = x
    for bc in cfg:
        cpo = bc["cout_p"]
        dil = bc["dilation"]
        w1h_ref = None
        if K > 1:
            w1h_ref = wrefs[idx]
            idx += 1
        w1t_ref = wrefs[idx]
        b1c_ref = wrefs[idx + 1]
        w2_ref = wrefs[idx + 2]
        b2_ref = wrefs[idx + 3]
        idx += 4

        cin_p = h.shape[-1]
        x2 = h.reshape(M, cin_p)

        # conv1: the unshifted (k=K-1) tap, with the 1x1 downsample fused into
        # the same MXU push (output width 2*cpo) when present.
        tail = jnp.dot(x2, w1t_ref[...], preferred_element_type=f32)
        tail = tail + b1c_ref[...]
        if bc["has_ds"]:
            h1 = tail[:, :cpo]
            res = tail[:, cpo:]
        else:
            h1 = tail
            res = x2.astype(f32)
        if K > 1:
            taps = causal_taps(h, dil)
            for k in range(K - 1):
                h1 = h1 + jnp.dot(taps[k].reshape(M, cin_p), w1h_ref[k],
                                  preferred_element_type=f32)
        h1 = jnp.maximum(h1, 0.0)
        # TODO(synk): nn.Dropout treated as identity (eval-mode semantics).

        # conv2 (dilated causal), K accumulating dots
        h1c = h1.astype(cdtype).reshape(NB, L, cpo)
        taps2 = causal_taps(h1c, dil)
        h2 = jnp.zeros((M, cpo), f32)
        for k in range(K):
            h2 = h2 + jnp.dot(taps2[k].reshape(M, cpo), w2_ref[k],
                              preferred_element_type=f32)
        h2 = jnp.maximum(h2 + b2_ref[...], 0.0)

        h = jnp.maximum(h2 + res, 0.0).astype(cdtype).reshape(NB, L, cpo)

    # ---- decoder on the last time step (== y[:, :, -1] in NCL layout) -------
    dw1_ref, db1_ref, dw2_ref, db2_ref = wrefs[idx:idx + 4]
    y = h[:, L - 1, :]                                           # (NB, c_last_p)
    hd = jnp.dot(y, dw1_ref[...], preferred_element_type=f32) + db1_ref[...]
    hd = jnp.maximum(hd, 0.0)
    # TODO(synk): decoder nn.Dropout treated as identity (eval-mode semantics).
    z = jnp.dot(hd.astype(cdtype), dw2_ref[...],
                preferred_element_type=f32) + db2_ref[...]
    approx = jnp.dtype(cdtype) != jnp.dtype(jnp.float32)
    sig = pl.reciprocal(1.0 + jnp.exp(-z), approx=approx)
    o_ref[...] = sig.reshape(NB, 1, -1).astype(o_ref.dtype)


# ------------------------------- forward --------------------------------------
def tcn_forward(x, packed_ops, meta):
    """x: (N, L, input_size) f32 — same layout the PyTorch model receives
    (it transposes to NCL internally; we stay channels-last throughout)."""
    N, L, cin = x.shape
    K = meta["K"]
    cfg = meta["cfg"]
    cdtype = meta["compute_dtype"]
    out_p = meta["out_p"]

    c_max_p = max(max(bc["cout_p"] for bc in cfg), cfg[0]["cin_p"])
    NB = _pick_batch_tile(N, L, c_max_p)
    grid = (N // NB,)

    in_specs = [pl.BlockSpec((NB, L, cin), lambda n: (n, 0, 0))]
    for arr in packed_ops:
        nd = arr.ndim
        in_specs.append(pl.BlockSpec(arr.shape, lambda n, _nd=nd: (0,) * _nd))
    out_spec = pl.BlockSpec((NB, 1, out_p), lambda n: (n, 0, 0))

    # cost estimate + VMEM footprint
    M = N * L
    flops = 0
    for bc in cfg:
        tail_w = (2 if bc["has_ds"] else 1) * bc["cout_p"]
        flops += 2 * M * bc["cin_p"] * ((K - 1) * bc["cout_p"] + tail_w)
        flops += 2 * M * K * bc["cout_p"] * bc["cout_p"]
    cpl, hp = packed_ops[-4].shape
    _, outp = packed_ops[-2].shape
    flops += 2 * N * (cpl * hp + hp * outp)
    transcendentals = N * outp
    weight_bytes = sum(int(a.size) * a.dtype.itemsize for a in packed_ops)
    bytes_accessed = N * L * cin * x.dtype.itemsize + weight_bytes + N * outp * 4

    act_bytes = 12 * NB * L * c_max_p * 4
    io_bytes = 2 * (NB * L * cin * x.dtype.itemsize + NB * out_p * 4)
    vmem_limit = int(min(64 << 20,
                         max(32 << 20,
                             2 * weight_bytes + act_bytes + io_bytes + (4 << 20))))

    kernel = functools.partial(_tcn_fused_kernel, cfg=cfg, K=K,
                               compute_dtype=cdtype)
    out = pl.pallas_call(
        kernel,
        out_shape=jax.ShapeDtypeStruct((N, 1, out_p), jnp.float32),
        grid_spec=pltpu.PrefetchScalarGridSpec(
            num_scalar_prefetch=0,
            grid=grid,
            in_specs=in_specs,
            out_specs=out_spec),
        compiler_params=pltpu.CompilerParams(
            dimension_semantics=("parallel",),
            vmem_limit_bytes=vmem_limit),
        cost_estimate=pl.CostEstimate(flops=int(flops),
                                      transcendentals=int(transcendentals),
                                      bytes_accessed=int(bytes_accessed)),
    )(x, *packed_ops)
    return out[:, 0, :meta["output_size"]]


# --------------------------- pure-JAX reference --------------------------------
def _temporal_block_ref(h, blk, K, dilation):
    n, l, _ = h.shape
    p = (K - 1) * dilation

    def conv(v, w, b):
        vp = jnp.pad(v, ((0, 0), (p, 0), (0, 0)))
        acc = jnp.zeros((n, l, w.shape[0]), jnp.float32)
        for k in range(K):
            acc += jnp.einsum("nli,oi->nlo",
                              vp[:, k * dilation:k * dilation + l, :], w[:, :, k])
        return acc + b.reshape(1, 1, -1)

    h1 = jax.nn.relu(conv(h, blk["w1"], blk["b1"]))
    h2 = jax.nn.relu(conv(h1, blk["w2"], blk["b2"]))
    if "wd" in blk:
        res = jnp.einsum("nli,oi->nlo", h, blk["wd"][:, :, 0]) \
            + blk["bd"].reshape(1, 1, -1)
    else:
        res = h
    return jax.nn.relu(h2 + res)


def tcn_model_ref(x, params, num_channels, kernel_size):
    h = x.astype(jnp.float32)
    for i in range(len(num_channels)):
        h = _temporal_block_ref(h, params["blocks"][i], kernel_size, 2 ** i)
    y = h[:, -1, :]
    hd = jax.nn.relu(y @ params["dec_w1"].T + params["dec_b1"])
    return jax.nn.sigmoid(hd @ params["dec_w2"].T + params["dec_b2"])


# ------------------------------ main ------------------------------------------
if __name__ == "__main__":
    # TCNModel(input_size=4, num_channels=[8, 16], kernel_size=3, output_size=49)
    N, L = 2, 16
    input_size = 4
    num_channels = [8, 16]
    K = 3
    output_size = 49

    kit = iter(jax.random.split(jax.random.PRNGKey(0), 32))
    x = jax.random.normal(next(kit), (N, L, input_size), jnp.float32)

    blocks = []
    cin = input_size
    for cout in num_channels:
        blk = {
            "w1": 0.3 * jax.random.normal(next(kit), (cout, cin, K), jnp.float32),
            "b1": 0.1 * jax.random.normal(next(kit), (cout,), jnp.float32),
            "w2": 0.3 * jax.random.normal(next(kit), (cout, cout, K), jnp.float32),
            "b2": 0.1 * jax.random.normal(next(kit), (cout,), jnp.float32),
        }
        if cin != cout:  # downsample 1x1 conv
            blk["wd"] = 0.3 * jax.random.normal(next(kit), (cout, cin, 1), jnp.float32)
            blk["bd"] = 0.1 * jax.random.normal(next(kit), (cout,), jnp.float32)
        blocks.append(blk)
        cin = cout

    params = {
        "blocks": blocks,
        "dec_w1": 0.2 * jax.random.normal(next(kit), (128, num_channels[-1]), jnp.float32),
        "dec_b1": 0.1 * jax.random.normal(next(kit), (128,), jnp.float32),
        "dec_w2": 0.2 * jax.random.normal(next(kit), (output_size, 128), jnp.float32),
        "dec_b2": 0.1 * jax.random.normal(next(kit), (output_size,), jnp.float32),
    }

    ref = tcn_model_ref(x, params, num_channels, K)

    # f32 compute mode: tight numerical check against the reference
    ops32, meta32 = pack_tcn_params(params, input_size=input_size,
                                    num_channels=num_channels, kernel_size=K,
                                    output_size=output_size,
                                    compute_dtype=jnp.float32)
    out_f32 = jax.block_until_ready(tcn_forward(x, ops32, meta32))
    np.testing.assert_allclose(np.asarray(out_f32), np.asarray(ref),
                               rtol=2e-3, atol=2e-3)

    # bf16 compute mode (performance configuration): loose check
    ops16, meta16 = pack_tcn_params(params, input_size=input_size,
                                    num_channels=num_channels, kernel_size=K,
                                    output_size=output_size,
                                    compute_dtype=jnp.bfloat16)
    out_bf16 = jax.block_until_ready(tcn_forward(x, ops16, meta16))
    np.testing.assert_allclose(np.asarray(out_bf16), np.asarray(ref),
                               rtol=1e-1, atol=5e-2)

    print("KERNEL_OK")
</pallas_src>

<mosaic_0001>
module attributes {stable_mosaic.version = 11 : i64} {
  func.func @_tcn_fused_kernel(%arg0: i32, %arg1: memref<1x16x4xf32, #tpu.memory_space<vmem>>, %arg2: memref<2x128x128xf32, #tpu.memory_space<vmem>>, %arg3: memref<128x256xf32, #tpu.memory_space<vmem>>, %arg4: memref<1x256xf32, #tpu.memory_space<vmem>>, %arg5: memref<3x128x128xf32, #tpu.memory_space<vmem>>, %arg6: memref<1x128xf32, #tpu.memory_space<vmem>>, %arg7: memref<2x128x128xf32, #tpu.memory_space<vmem>>, %arg8: memref<128x256xf32, #tpu.memory_space<vmem>>, %arg9: memref<1x256xf32, #tpu.memory_space<vmem>>, %arg10: memref<3x128x128xf32, #tpu.memory_space<vmem>>, %arg11: memref<1x128xf32, #tpu.memory_space<vmem>>, %arg12: memref<128x128xf32, #tpu.memory_space<vmem>>, %arg13: memref<1x128xf32, #tpu.memory_space<vmem>>, %arg14: memref<128x128xf32, #tpu.memory_space<vmem>>, %arg15: memref<1x128xf32, #tpu.memory_space<vmem>>, %arg16: memref<1x1x128xf32, #tpu.memory_space<vmem>>) attributes {dimension_semantics = [#tpu.dimension_semantics<parallel>], iteration_bounds = array<i64: 2>, scalar_prefetch = 0 : i64, scratch_operands = 0 : i64, tpu.core_type = #tpu.core_type<tc>, window_params = [{transform_indices = @transform_0, window_bounds = array<i64: 1, 16, 4>}, {pipeline_mode = #tpu.pipeline_mode<synchronous>, transform_indices = @transform_1, window_bounds = array<i64: 2, 128, 128>}, {pipeline_mode = #tpu.pipeline_mode<synchronous>, transform_indices = @transform_2, window_bounds = array<i64: 128, 256>}, {pipeline_mode = #tpu.pipeline_mode<synchronous>, transform_indices = @transform_3, window_bounds = array<i64: 1, 256>}, {pipeline_mode = #tpu.pipeline_mode<synchronous>, transform_indices = @transform_4, window_bounds = array<i64: 3, 128, 128>}, {pipeline_mode = #tpu.pipeline_mode<synchronous>, transform_indices = @transform_5, window_bounds = array<i64: 1, 128>}, {pipeline_mode = #tpu.pipeline_mode<synchronous>, transform_indices = @transform_6, window_bounds = array<i64: 2, 128, 128>}, {pipeline_mode = #tpu.pipeline_mode<synchronous>, transform_indices = @transform_7, window_bounds = array<i64: 128, 256>}, {pipeline_mode = #tpu.pipeline_mode<synchronous>, transform_indices = @transform_8, window_bounds = array<i64: 1, 256>}, {pipeline_mode = #tpu.pipeline_mode<synchronous>, transform_indices = @transform_9, window_bounds = array<i64: 3, 128, 128>}, {pipeline_mode = #tpu.pipeline_mode<synchronous>, transform_indices = @transform_10, window_bounds = array<i64: 1, 128>}, {pipeline_mode = #tpu.pipeline_mode<synchronous>, transform_indices = @transform_11, window_bounds = array<i64: 128, 128>}, {pipeline_mode = #tpu.pipeline_mode<synchronous>, transform_indices = @transform_12, window_bounds = array<i64: 1, 128>}, {pipeline_mode = #tpu.pipeline_mode<synchronous>, transform_indices = @transform_13, window_bounds = array<i64: 128, 128>}, {pipeline_mode = #tpu.pipeline_mode<synchronous>, transform_indices = @transform_14, window_bounds = array<i64: 1, 128>}, {transform_indices = @transform_15, window_bounds = array<i64: 1, 1, 128>}]} {
    %c0 = arith.constant 0 : index
    %c0_0 = arith.constant 0 : index
    %c0_1 = arith.constant 0 : index
    %0 = vector.load %arg1[%c0, %c0_0, %c0_1] : memref<1x16x4xf32, #tpu.memory_space<vmem>>, vector<1x16x4xf32>
    %cst = arith.constant 0.000000e+00 : f32
    %1 = vector.broadcast %cst : f32 to vector<1x16x124xf32>
    %2 = tpu.concatenate %0, %1 in 2 : vector<1x16x4xf32>, vector<1x16x124xf32> -> vector<1x16x128xf32>
    %3 = vector.shape_cast %2 : vector<1x16x128xf32> to vector<16x128xf32>
    %c0_2 = arith.constant 0 : index
    %c0_3 = arith.constant 0 : index
    %4 = vector.load %arg3[%c0_2, %c0_3] : memref<128x256xf32, #tpu.memory_space<vmem>>, vector<128x256xf32>
    %cst_4 = arith.constant dense<0.000000e+00> : vector<16x256xf32>
    %5 = tpu.matmul %3, %4, %cst_4 {dimension_numbers = #tpu.dot_dimension_numbers<[1], [0], [0], [1], [0, 0, 1, 1], [], []>} : vector<16x128xf32>, vector<128x256xf32>, vector<16x256xf32> -> vector<16x256xf32>
    %c0_5 = arith.constant 0 : index
    %c0_6 = arith.constant 0 : index
    %6 = vector.load %arg4[%c0_5, %c0_6] : memref<1x256xf32, #tpu.memory_space<vmem>>, vector<1x256xf32>
    %7 = vector.broadcast %6 : vector<1x256xf32> to vector<16x256xf32>
    %8 = arith.addf %5, %7 : vector<16x256xf32>
    %9 = vector.extract_strided_slice %8 {offsets = [0, 0], sizes = [16, 128], strides = [1, 1]} : vector<16x256xf32> to vector<16x128xf32>
    %10 = vector.extract_strided_slice %8 {offsets = [0, 128], sizes = [16, 128], strides = [1, 1]} : vector<16x256xf32> to vector<16x128xf32>
    %cst_7 = arith.constant 0.000000e+00 : f32
    %11 = vector.broadcast %cst_7 : f32 to vector<1x2x128xf32>
    %12 = tpu.concatenate %11, %2 in 1 : vector<1x2x128xf32>, vector<1x16x128xf32> -> vector<1x18x128xf32>
    %13 = vector.extract_strided_slice %12 {offsets = [0, 0, 0], sizes = [1, 16, 128], strides = [1, 1, 1]} : vector<1x18x128xf32> to vector<1x16x128xf32>
    %14 = vector.extract_strided_slice %12 {offsets = [0, 1, 0], sizes = [1, 16, 128], strides = [1, 1, 1]} : vector<1x18x128xf32> to vector<1x16x128xf32>
    %15 = vector.shape_cast %13 : vector<1x16x128xf32> to vector<16x128xf32>
    %c0_8 = arith.constant 0 : index
    %c0_9 = arith.constant 0 : index
    %c0_10 = arith.constant 0 : index
    %16 = vector.load %arg2[%c0_8, %c0_9, %c0_10] : memref<2x128x128xf32, #tpu.memory_space<vmem>>, vector<1x128x128xf32>
    %17 = vector.shape_cast %16 : vector<1x128x128xf32> to vector<128x128xf32>
    %cst_11 = arith.constant dense<0.000000e+00> : vector<16x128xf32>
    %18 = tpu.matmul %15, %17, %cst_11 {dimension_numbers = #tpu.dot_dimension_numbers<[1], [0], [0], [1], [0, 0, 1, 1], [], []>} : vector<16x128xf32>, vector<128x128xf32>, vector<16x128xf32> -> vector<16x128xf32>
    %19 = arith.addf %9, %18 : vector<16x128xf32>
    %20 = vector.shape_cast %14 : vector<1x16x128xf32> to vector<16x128xf32>
    %c1 = arith.constant 1 : index
    %c0_12 = arith.constant 0 : index
    %c0_13 = arith.constant 0 : index
    %21 = vector.load %arg2[%c1, %c0_12, %c0_13] : memref<2x128x128xf32, #tpu.memory_space<vmem>>, vector<1x128x128xf32>
    %22 = vector.shape_cast %21 : vector<1x128x128xf32> to vector<128x128xf32>
    %cst_14 = arith.constant dense<0.000000e+00> : vector<16x128xf32>
    %23 = tpu.matmul %20, %22, %cst_14 {dimension_numbers = #tpu.dot_dimension_numbers<[1], [0], [0], [1], [0, 0, 1, 1], [], []>} : vector<16x128xf32>, vector<128x128xf32>, vector<16x128xf32> -> vector<16x128xf32>
    %24 = arith.addf %19, %23 : vector<16x128xf32>
    %cst_15 = arith.constant 0.000000e+00 : f32
    %25 = vector.broadcast %cst_15 : f32 to vector<16x128xf32>
    %26 = arith.maximumf %24, %25 : vector<16x128xf32>
    %27 = vector.shape_cast %26 : vector<16x128xf32> to vector<1x16x128xf32>
    %cst_16 = arith.constant 0.000000e+00 : f32
    %28 = vector.broadcast %cst_16 : f32 to vector<1x2x128xf32>
    %29 = tpu.concatenate %28, %27 in 1 : vector<1x2x128xf32>, vector<1x16x128xf32> -> vector<1x18x128xf32>
    %30 = vector.extract_strided_slice %29 {offsets = [0, 0, 0], sizes = [1, 16, 128], strides = [1, 1, 1]} : vector<1x18x128xf32> to vector<1x16x128xf32>
    %31 = vector.extract_strided_slice %29 {offsets = [0, 1, 0], sizes = [1, 16, 128], strides = [1, 1, 1]} : vector<1x18x128xf32> to vector<1x16x128xf32>
    %32 = vector.extract_strided_slice %29 {offsets = [0, 2, 0], sizes = [1, 16, 128], strides = [1, 1, 1]} : vector<1x18x128xf32> to vector<1x16x128xf32>
    %cst_17 = arith.constant 0.000000e+00 : f32
    %33 = vector.broadcast %cst_17 : f32 to vector<16x128xf32>
    %34 = vector.shape_cast %30 : vector<1x16x128xf32> to vector<16x128xf32>
    %c0_18 = arith.constant 0 : index
    %c0_19 = arith.constant 0 : index
    %c0_20 = arith.constant 0 : index
    %35 = vector.load %arg5[%c0_18, %c0_19, %c0_20] : memref<3x128x128xf32, #tpu.memory_space<vmem>>, vector<1x128x128xf32>
    %36 = vector.shape_cast %35 : vector<1x128x128xf32> to vector<128x128xf32>
    %cst_21 = arith.constant dense<0.000000e+00> : vector<16x128xf32>
    %37 = tpu.matmul %34, %36, %cst_21 {dimension_numbers = #tpu.dot_dimension_numbers<[1], [0], [0], [1], [0, 0, 1, 1], [], []>} : vector<16x128xf32>, vector<128x128xf32>, vector<16x128xf32> -> vector<16x128xf32>
    %38 = arith.addf %33, %37 : vector<16x128xf32>
    %39 = vector.shape_cast %31 : vector<1x16x128xf32> to vector<16x128xf32>
    %c1_22 = arith.constant 1 : index
    %c0_23 = arith.constant 0 : index
    %c0_24 = arith.constant 0 : index
    %40 = vector.load %arg5[%c1_22, %c0_23, %c0_24] : memref<3x128x128xf32, #tpu.memory_space<vmem>>, vector<1x128x128xf32>
    %41 = vector.shape_cast %40 : vector<1x128x128xf32> to vector<128x128xf32>
    %cst_25 = arith.constant dense<0.000000e+00> : vector<16x128xf32>
    %42 = tpu.matmul %39, %41, %cst_25 {dimension_numbers = #tpu.dot_dimension_numbers<[1], [0], [0], [1], [0, 0, 1, 1], [], []>} : vector<16x128xf32>, vector<128x128xf32>, vector<16x128xf32> -> vector<16x128xf32>
    %43 = arith.addf %38, %42 : vector<16x128xf32>
    %44 = vector.shape_cast %32 : vector<1x16x128xf32> to vector<16x128xf32>
    %c2 = arith.constant 2 : index
    %c0_26 = arith.constant 0 : index
    %c0_27 = arith.constant 0 : index
    %45 = vector.load %arg5[%c2, %c0_26, %c0_27] : memref<3x128x128xf32, #tpu.memory_space<vmem>>, vector<1x128x128xf32>
    %46 = vector.shape_cast %45 : vector<1x128x128xf32> to vector<128x128xf32>
    %cst_28 = arith.constant dense<0.000000e+00> : vector<16x128xf32>
    %47 = tpu.matmul %44, %46, %cst_28 {dimension_numbers = #tpu.dot_dimension_numbers<[1], [0], [0], [1], [0, 0, 1, 1], [], []>} : vector<16x128xf32>, vector<128x128xf32>, vector<16x128xf32> -> vector<16x128xf32>
    %48 = arith.addf %43, %47 : vector<16x128xf32>
    %c0_29 = arith.constant 0 : index
    %c0_30 = arith.constant 0 : index
    %49 = vector.load %arg6[%c0_29, %c0_30] : memref<1x128xf32, #tpu.memory_space<vmem>>, vector<1x128xf32>
    %50 = vector.broadcast %49 : vector<1x128xf32> to vector<16x128xf32>
    %51 = arith.addf %48, %50 : vector<16x128xf32>
    %cst_31 = arith.constant 0.000000e+00 : f32
    %52 = vector.broadcast %cst_31 : f32 to vector<16x128xf32>
    %53 = arith.maximumf %51, %52 : vector<16x128xf32>
    %54 = arith.addf %53, %10 : vector<16x128xf32>
    %cst_32 = arith.constant 0.000000e+00 : f32
    %55 = vector.broadcast %cst_32 : f32 to vector<16x128xf32>
    %56 = arith.maximumf %54, %55 : vector<16x128xf32>
    %57 = vector.shape_cast %56 : vector<16x128xf32> to vector<1x16x128xf32>
    %58 = vector.shape_cast %57 : vector<1x16x128xf32> to vector<16x128xf32>
    %c0_33 = arith.constant 0 : index
    %c0_34 = arith.constant 0 : index
    %59 = vector.load %arg8[%c0_33, %c0_34] : memref<128x256xf32, #tpu.memory_space<vmem>>, vector<128x256xf32>
    %cst_35 = arith.constant dense<0.000000e+00> : vector<16x256xf32>
    %60 = tpu.matmul %58, %59, %cst_35 {dimension_numbers = #tpu.dot_dimension_numbers<[1], [0], [0], [1], [0, 0, 1, 1], [], []>} : vector<16x128xf32>, vector<128x256xf32>, vector<16x256xf32> -> vector<16x256xf32>
    %c0_36 = arith.constant 0 : index
    %c0_37 = arith.constant 0 : index
    %61 = vector.load %arg9[%c0_36, %c0_37] : memref<1x256xf32, #tpu.memory_space<vmem>>, vector<1x256xf32>
    %62 = vector.broadcast %61 : vector<1x256xf32> to vector<16x256xf32>
    %63 = arith.addf %60, %62 : vector<16x256xf32>
    %64 = vector.extract_strided_slice %63 {offsets = [0, 0], sizes = [16, 128], strides = [1, 1]} : vector<16x256xf32> to vector<16x128xf32>
    %65 = vector.extract_strided_slice %63 {offsets = [0, 128], sizes = [16, 128], strides = [1, 1]} : vector<16x256xf32> to vector<16x128xf32>
    %cst_38 = arith.constant 0.000000e+00 : f32
    %66 = vector.broadcast %cst_38 : f32 to vector<1x4x128xf32>
    %67 = tpu.concatenate %66, %57 in 1 : vector<1x4x128xf32>, vector<1x16x128xf32> -> vector<1x20x128xf32>
    %68 = vector.extract_strided_slice %67 {offsets = [0, 0, 0], sizes = [1, 16, 128], strides = [1, 1, 1]} : vector<1x20x128xf32> to vector<1x16x128xf32>
    %69 = vector.extract_strided_slice %67 {offsets = [0, 2, 0], sizes = [1, 16, 128], strides = [1, 1, 1]} : vector<1x20x128xf32> to vector<1x16x128xf32>
    %70 = vector.shape_cast %68 : vector<1x16x128xf32> to vector<16x128xf32>
    %c0_39 = arith.constant 0 : index
    %c0_40 = arith.constant 0 : index
    %c0_41 = arith.constant 0 : index
    %71 = vector.load %arg7[%c0_39, %c0_40, %c0_41] : memref<2x128x128xf32, #tpu.memory_space<vmem>>, vector<1x128x128xf32>
    %72 = vector.shape_cast %71 : vector<1x128x128xf32> to vector<128x128xf32>
    %cst_42 = arith.constant dense<0.000000e+00> : vector<16x128xf32>
    %73 = tpu.matmul %70, %72, %cst_42 {dimension_numbers = #tpu.dot_dimension_numbers<[1], [0], [0], [1], [0, 0, 1, 1], [], []>} : vector<16x128xf32>, vector<128x128xf32>, vector<16x128xf32> -> vector<16x128xf32>
    %74 = arith.addf %64, %73 : vector<16x128xf32>
    %75 = vector.shape_cast %69 : vector<1x16x128xf32> to vector<16x128xf32>
    %c1_43 = arith.constant 1 : index
    %c0_44 = arith.constant 0 : index
    %c0_45 = arith.constant 0 : index
    %76 = vector.load %arg7[%c1_43, %c0_44, %c0_45] : memref<2x128x128xf32, #tpu.memory_space<vmem>>, vector<1x128x128xf32>
    %77 = vector.shape_cast %76 : vector<1x128x128xf32> to vector<128x128xf32>
    %cst_46 = arith.constant dense<0.000000e+00> : vector<16x128xf32>
    %78 = tpu.matmul %75, %77, %cst_46 {dimension_numbers = #tpu.dot_dimension_numbers<[1], [0], [0], [1], [0, 0, 1, 1], [], []>} : vector<16x128xf32>, vector<128x128xf32>, vector<16x128xf32> -> vector<16x128xf32>
    %79 = arith.addf %74, %78 : vector<16x128xf32>
    %cst_47 = arith.constant 0.000000e+00 : f32
    %80 = vector.broadcast %cst_47 : f32 to vector<16x128xf32>
    %81 = arith.maximumf %79, %80 : vector<16x128xf32>
    %82 = vector.shape_cast %81 : vector<16x128xf32> to vector<1x16x128xf32>
    %cst_48 = arith.constant 0.000000e+00 : f32
    %83 = vector.broadcast %cst_48 : f32 to vector<1x4x128xf32>
    %84 = tpu.concatenate %83, %82 in 1 : vector<1x4x128xf32>, vector<1x16x128xf32> -> vector<1x20x128xf32>
    %85 = vector.extract_strided_slice %84 {offsets = [0, 0, 0], sizes = [1, 16, 128], strides = [1, 1, 1]} : vector<1x20x128xf32> to vector<1x16x128xf32>
    %86 = vector.extract_strided_slice %84 {offsets = [0, 2, 0], sizes = [1, 16, 128], strides = [1, 1, 1]} : vector<1x20x128xf32> to vector<1x16x128xf32>
    %87 = vector.extract_strided_slice %84 {offsets = [0, 4, 0], sizes = [1, 16, 128], strides = [1, 1, 1]} : vector<1x20x128xf32> to vector<1x16x128xf32>
    %cst_49 = arith.constant 0.000000e+00 : f32
    %88 = vector.broadcast %cst_49 : f32 to vector<16x128xf32>
    %89 = vector.shape_cast %85 : vector<1x16x128xf32> to vector<16x128xf32>
    %c0_50 = arith.constant 0 : index
    %c0_51 = arith.constant 0 : index
    %c0_52 = arith.constant 0 : index
    %90 = vector.load %arg10[%c0_50, %c0_51, %c0_52] : memref<3x128x128xf32, #tpu.memory_space<vmem>>, vector<1x128x128xf32>
    %91 = vector.shape_cast %90 : vector<1x128x128xf32> to vector<128x128xf32>
    %cst_53 = arith.constant dense<0.000000e+00> : vector<16x128xf32>
    %92 = tpu.matmul %89, %91, %cst_53 {dimension_numbers = #tpu.dot_dimension_numbers<[1], [0], [0], [1], [0, 0, 1, 1], [], []>} : vector<16x128xf32>, vector<128x128xf32>, vector<16x128xf32> -> vector<16x128xf32>
    %93 = arith.addf %88, %92 : vector<16x128xf32>
    %94 = vector.shape_cast %86 : vector<1x16x128xf32> to vector<16x128xf32>
    %c1_54 = arith.constant 1 : index
    %c0_55 = arith.constant 0 : index
    %c0_56 = arith.constant 0 : index
    %95 = vector.load %arg10[%c1_54, %c0_55, %c0_56] : memref<3x128x128xf32, #tpu.memory_space<vmem>>, vector<1x128x128xf32>
    %96 = vector.shape_cast %95 : vector<1x128x128xf32> to vector<128x128xf32>
    %cst_57 = arith.constant dense<0.000000e+00> : vector<16x128xf32>
    %97 = tpu.matmul %94, %96, %cst_57 {dimension_numbers = #tpu.dot_dimension_numbers<[1], [0], [0], [1], [0, 0, 1, 1], [], []>} : vector<16x128xf32>, vector<128x128xf32>, vector<16x128xf32> -> vector<16x128xf32>
    %98 = arith.addf %93, %97 : vector<16x128xf32>
    %99 = vector.shape_cast %87 : vector<1x16x128xf32> to vector<16x128xf32>
    %c2_58 = arith.constant 2 : index
    %c0_59 = arith.constant 0 : index
    %c0_60 = arith.constant 0 : index
    %100 = vector.load %arg10[%c2_58, %c0_59, %c0_60] : memref<3x128x128xf32, #tpu.memory_space<vmem>>, vector<1x128x128xf32>
    %101 = vector.shape_cast %100 : vector<1x128x128xf32> to vector<128x128xf32>
    %cst_61 = arith.constant dense<0.000000e+00> : vector<16x128xf32>
    %102 = tpu.matmul %99, %101, %cst_61 {dimension_numbers = #tpu.dot_dimension_numbers<[1], [0], [0], [1], [0, 0, 1, 1], [], []>} : vector<16x128xf32>, vector<128x128xf32>, vector<16x128xf32> -> vector<16x128xf32>
    %103 = arith.addf %98, %102 : vector<16x128xf32>
    %c0_62 = arith.constant 0 : index
    %c0_63 = arith.constant 0 : index
    %104 = vector.load %arg11[%c0_62, %c0_63] : memref<1x128xf32, #tpu.memory_space<vmem>>, vector<1x128xf32>
    %105 = vector.broadcast %104 : vector<1x128xf32> to vector<16x128xf32>
    %106 = arith.addf %103, %105 : vector<16x128xf32>
    %cst_64 = arith.constant 0.000000e+00 : f32
    %107 = vector.broadcast %cst_64 : f32 to vector<16x128xf32>
    %108 = arith.maximumf %106, %107 : vector<16x128xf32>
    %109 = arith.addf %108, %65 : vector<16x128xf32>
    %cst_65 = arith.constant 0.000000e+00 : f32
    %110 = vector.broadcast %cst_65 : f32 to vector<16x128xf32>
    %111 = arith.maximumf %109, %110 : vector<16x128xf32>
    %112 = vector.shape_cast %111 : vector<16x128xf32> to vector<1x16x128xf32>
    %113 = vector.extract_strided_slice %112 {offsets = [0, 15, 0], sizes = [1, 1, 128], strides = [1, 1, 1]} : vector<1x16x128xf32> to vector<1x1x128xf32>
    %114 = vector.shape_cast %113 : vector<1x1x128xf32> to vector<1x128xf32>
    %c0_66 = arith.constant 0 : index
    %c0_67 = arith.constant 0 : index
    %115 = vector.load %arg12[%c0_66, %c0_67] : memref<128x128xf32, #tpu.memory_space<vmem>>, vector<128x128xf32>
    %cst_68 = arith.constant dense<0.000000e+00> : vector<1x128xf32>
    %116 = tpu.matmul %114, %115, %cst_68 {dimension_numbers = #tpu.dot_dimension_numbers<[1], [0], [0], [1], [0, 0, 1, 1], [], []>} : vector<1x128xf32>, vector<128x128xf32>, vector<1x128xf32> -> vector<1x128xf32>
    %c0_69 = arith.constant 0 : index
    %c0_70 = arith.constant 0 : index
    %117 = vector.load %arg13[%c0_69, %c0_70] : memref<1x128xf32, #tpu.memory_space<vmem>>, vector<1x128xf32>
    %118 = arith.addf %116, %117 : vector<1x128xf32>
    %cst_71 = arith.constant 0.000000e+00 : f32
    %119 = vector.broadcast %cst_71 : f32 to vector<1x128xf32>
    %120 = arith.maximumf %118, %119 : vector<1x128xf32>
    %c0_72 = arith.constant 0 : index
    %c0_73 = arith.constant 0 : index
    %121 = vector.load %arg14[%c0_72, %c0_73] : memref<128x128xf32, #tpu.memory_space<vmem>>, vector<128x128xf32>
    %cst_74 = arith.constant dense<0.000000e+00> : vector<1x128xf32>
    %122 = tpu.matmul %120, %121, %cst_74 {dimension_numbers = #tpu.dot_dimension_numbers<[1], [0], [0], [1], [0, 0, 1, 1], [], []>} : vector<1x128xf32>, vector<128x128xf32>, vector<1x128xf32> -> vector<1x128xf32>
    %c0_75 = arith.constant 0 : index
    %c0_76 = arith.constant 0 : index
    %123 = vector.load %arg15[%c0_75, %c0_76] : memref<1x128xf32, #tpu.memory_space<vmem>>, vector<1x128xf32>
    %124 = arith.addf %122, %123 : vector<1x128xf32>
    %cst_77 = arith.constant 0.000000e+00 : f32
    %125 = vector.broadcast %cst_77 : f32 to vector<1x128xf32>
    %126 = arith.subf %125, %124 : vector<1x128xf32>
    %127 = math.exp %126 : vector<1x128xf32>
    %cst_78 = arith.constant 1.000000e+00 : f32
    %128 = vector.broadcast %cst_78 : f32 to vector<1x128xf32>
    %129 = arith.addf %128, %127 : vector<1x128xf32>
    %130 = tpu.reciprocal %129 : vector<1x128xf32> -> vector<1x128xf32>
    %131 = vector.shape_cast %130 : vector<1x128xf32> to vector<1x1x128xf32>
    %c0_79 = arith.constant 0 : index
    %c0_80 = arith.constant 0 : index
    %c0_81 = arith.constant 0 : index
    %132 = vector.load %arg16[%c0_79, %c0_80, %c0_81] : memref<1x1x128xf32, #tpu.memory_space<vmem>>, vector<1x1x128xf32>
    tpu.vector_store %arg16[%c0_79, %c0_80, %c0_81], %131 {strides = array<i32>} : memref<1x1x128xf32, #tpu.memory_space<vmem>>, vector<1x1x128xf32>,
    return
  }
  func.func @transform_0(%arg0: i32) -> (i32, i32, i32) {
    %c0_i32 = arith.constant 0 : i32
    %c0_i32_0 = arith.constant 0 : i32
    %c0_i32_1 = arith.constant 0 : i32
    return %arg0, %c0_i32, %c0_i32_0 : i32, i32, i32
  }
  func.func @transform_1(%arg0: i32) -> (i32, i32, i32) {
    %c0_i32 = arith.constant 0 : i32
    %c0_i32_0 = arith.constant 0 : i32
    %c0_i32_1 = arith.constant 0 : i32
    %c0_i32_2 = arith.constant 0 : i32
    return %c0_i32, %c0_i32_0, %c0_i32_1 : i32, i32, i32
  }
  func.func @transform_2(%arg0: i32) -> (i32, i32) {
    %c0_i32 = arith.constant 0 : i32
    %c0_i32_0 = arith.constant 0 : i32
    %c0_i32_1 = arith.constant 0 : i32
    return %c0_i32, %c0_i32_0 : i32, i32
  }
  func.func @transform_3(%arg0: i32) -> (i32, i32) {
    %c0_i32 = arith.constant 0 : i32
    %c0_i32_0 = arith.constant 0 : i32
    %c0_i32_1 = arith.constant 0 : i32
    return %c0_i32, %c0_i32_0 : i32, i32
  }
  func.func @transform_4(%arg0: i32) -> (i32, i32, i32) {
    %c0_i32 = arith.constant 0 : i32
    %c0_i32_0 = arith.constant 0 : i32
    %c0_i32_1 = arith.constant 0 : i32
    %c0_i32_2 = arith.constant 0 : i32
    return %c0_i32, %c0_i32_0, %c0_i32_1 : i32, i32, i32
  }
  func.func @transform_5(%arg0: i32) -> (i32, i32) {
    %c0_i32 = arith.constant 0 : i32
    %c0_i32_0 = arith.constant 0 : i32
    %c0_i32_1 = arith.constant 0 : i32
    return %c0_i32, %c0_i32_0 : i32, i32
  }
  func.func @transform_6(%arg0: i32) -> (i32, i32, i32) {
    %c0_i32 = arith.constant 0 : i32
    %c0_i32_0 = arith.constant 0 : i32
    %c0_i32_1 = arith.constant 0 : i32
    %c0_i32_2 = arith.constant 0 : i32
    return %c0_i32, %c0_i32_0, %c0_i32_1 : i32, i32, i32
  }
  func.func @transform_7(%arg0: i32) -> (i32, i32) {
    %c0_i32 = arith.constant 0 : i32
    %c0_i32_0 = arith.constant 0 : i32
    %c0_i32_1 = arith.constant 0 : i32
    return %c0_i32, %c0_i32_0 : i32, i32
  }
  func.func @transform_8(%arg0: i32) -> (i32, i32) {
    %c0_i32 = arith.constant 0 : i32
    %c0_i32_0 = arith.constant 0 : i32
    %c0_i32_1 = arith.constant 0 : i32
    return %c0_i32, %c0_i32_0 : i32, i32
  }
  func.func @transform_9(%arg0: i32) -> (i32, i32, i32) {
    %c0_i32 = arith.constant 0 : i32
    %c0_i32_0 = arith.constant 0 : i32
    %c0_i32_1 = arith.constant 0 : i32
    %c0_i32_2 = arith.constant 0 : i32
    return %c0_i32, %c0_i32_0, %c0_i32_1 : i32, i32, i32
  }
  func.func @transform_10(%arg0: i32) -> (i32, i32) {
    %c0_i32 = arith.constant 0 : i32
    %c0_i32_0 = arith.constant 0 : i32
    %c0_i32_1 = arith.constant 0 : i32
    return %c0_i32, %c0_i32_0 : i32, i32
  }
  func.func @transform_11(%arg0: i32) -> (i32, i32) {
    %c0_i32 = arith.constant 0 : i32
    %c0_i32_0 = arith.constant 0 : i32
    %c0_i32_1 = arith.constant 0 : i32
    return %c0_i32, %c0_i32_0 : i32, i32
  }
  func.func @transform_12(%arg0: i32) -> (i32, i32) {
    %c0_i32 = arith.constant 0 : i32
    %c0_i32_0 = arith.constant 0 : i32
    %c0_i32_1 = arith.constant 0 : i32
    return %c0_i32, %c0_i32_0 : i32, i32
  }
  func.func @transform_13(%arg0: i32) -> (i32, i32) {
    %c0_i32 = arith.constant 0 : i32
    %c0_i32_0 = arith.constant 0 : i32
    %c0_i32_1 = arith.constant 0 : i32
    return %c0_i32, %c0_i32_0 : i32, i32
  }
  func.func @transform_14(%arg0: i32) -> (i32, i32) {
    %c0_i32 = arith.constant 0 : i32
    %c0_i32_0 = arith.constant 0 : i32
    %c0_i32_1 = arith.constant 0 : i32
    return %c0_i32, %c0_i32_0 : i32, i32
  }
  func.func @transform_15(%arg0: i32) -> (i32, i32, i32) {
    %c0_i32 = arith.constant 0 : i32
    %c0_i32_0 = arith.constant 0 : i32
    %c0_i32_1 = arith.constant 0 : i32
    return %arg0, %c0_i32, %c0_i32_0 : i32, i32, i32
  }
}

</mosaic_0001>

<llo_original>
// kernel: tpu_custom_call.1
$region0: #{tpu_custom_call.1}
  #allocation0 [shape = 'u32[]', space=smem, size = 0x4, offset = 0x4, fixed_abs, tag = 'smem constant byte address 0x4 - core index']
  #allocation1 [shape = 'u32[144,128]{1,0:T(1,128)}', space=vmem, size = 0x12000, scoped, tag = 'internal scratch']
  %s0 = inlined_call_operand.vmem [shape: f32[2,16,4], index: 0, kind: input, shape index: {}]
  %s1 = inlined_call_operand.hbm [shape: f32[2,128,128], index: 1, kind: input, shape index: {}]
  %s2 = inlined_call_operand.hbm [shape: f32[128,256], index: 2, kind: input, shape index: {}]
  %s3 = inlined_call_operand.vmem [shape: f32[1,256], index: 3, kind: input, shape index: {}]
  %s4 = inlined_call_operand.hbm [shape: f32[3,128,128], index: 4, kind: input, shape index: {}]
  %s5 = inlined_call_operand.vmem [shape: f32[1,128], index: 5, kind: input, shape index: {}]
  %s6 = inlined_call_operand.hbm [shape: f32[2,128,128], index: 6, kind: input, shape index: {}]
  %s7 = inlined_call_operand.hbm [shape: f32[128,256], index: 7, kind: input, shape index: {}]
  %s8 = inlined_call_operand.vmem [shape: f32[1,256], index: 8, kind: input, shape index: {}]
  %s9 = inlined_call_operand.hbm [shape: f32[3,128,128], index: 9, kind: input, shape index: {}]
  %s10 = inlined_call_operand.vmem [shape: f32[1,128], index: 10, kind: input, shape index: {}]
  %s11 = inlined_call_operand.hbm [shape: f32[128,128], index: 11, kind: input, shape index: {}]
  %s12 = inlined_call_operand.vmem [shape: f32[1,128], index: 12, kind: input, shape index: {}]
  %s13 = inlined_call_operand.hbm [shape: f32[128,128], index: 13, kind: input, shape index: {}]
  %s14 = inlined_call_operand.vmem [shape: f32[1,128], index: 14, kind: input, shape index: {}]
  %s15 = inlined_call_operand.hbm [shape: f32[2,1,128], index: 15, kind: output, shape index: {}]
  %s16 = sld [smem:[#allocation0]]
  $region125: #{tpu_custom_call.1} parent=0
    _
  %s18 = ssub.s32 1, %s16
  %s19 = scalar_select 0, %s18, %s16
  $region1: #{tpu_custom_call.1} parent=0
    #allocation2 [shape = 'u8[131072]{0}', space=vmem, size = 0x20000, scoped, tag = 'input window, operand 1, single buffered']
    #allocation3 [shape = 's32[2]{0}', space=sflag, size = 0x8, scoped, tag = 'scoped memory for tpu_custom_call.1']
    #allocation4 [shape = 's32[2]{0}', space=sflag, size = 0x8, scoped, tag = 'scoped memory for tpu_custom_call.1']
    #allocation5 [shape = 'u8[131072]{0}', space=vmem, size = 0x20000, scoped, tag = 'input window, operand 2, single buffered']
    #allocation6 [shape = 's32[1]{0}', space=sflag, size = 0x4, scoped, tag = 'scoped memory for tpu_custom_call.1']
    #allocation7 [shape = 'u8[196608]{0}', space=vmem, size = 0x30000, scoped, tag = 'input window, operand 4, single buffered']
    #allocation8 [shape = 'u8[131072]{0}', space=vmem, size = 0x20000, scoped, tag = 'input window, operand 6, single buffered']
    #allocation9 [shape = 's32[1]{0}', space=sflag, size = 0x4, scoped, tag = 'scoped memory for tpu_custom_call.1']
    #allocation10 [shape = 'u8[131072]{0}', space=vmem, size = 0x20000, scoped, tag = 'input window, operand 7, single buffered']
    #allocation11 [shape = 'u8[196608]{0}', space=vmem, size = 0x30000, scoped, tag = 'input window, operand 9, single buffered']
    #allocation12 [shape = 's32[1]{0}', space=sflag, size = 0x4, scoped, tag = 'scoped memory for tpu_custom_call.1']
    #allocation13 [shape = 'u8[65536]{0}', space=vmem, size = 0x10000, scoped, tag = 'input window, operand 11, single buffered']
    #allocation14 [shape = 'u8[65536]{0}', space=vmem, size = 0x10000, scoped, tag = 'input window, operand 13, single buffered']
    #allocation15 [shape = 's32[1]{0}', space=sflag, size = 0x4, scoped, tag = 'scoped memory for tpu_custom_call.1']
    #allocation16 [shape = 'u8[1024]{0}', space=vmem, size = 0x400, scoped, tag = 'output window, operand 0']
    %20 = vsyncpa [#allocation3], 0
    %21 = vsyncpa [#allocation6], 0
    %22 = vsyncpa [#allocation9], 0
    %23 = vsyncpa [#allocation12], 0
    %24 = vsyncpa [#allocation15], 0
    %25 = vsyncpa [#allocation4], 0
    %s26 = scalar_lea.sflag [#allocation4], 1
    %27 = vsyncpa %s26, 0
    loop: start=0, step=1, limit=4
    $region2: #{tpu_custom_call.1} parent=1 // loop_pre_header
      _
    $region3: #{tpu_custom_call.1} parent=1 // loop_header
      %s29 = sphi 0, %s33
      %p30 = scmp.ge.s32.totalorder %s29, 4
      %s39 = sphi 0, %s41
      %s42 = sphi 0, %s39
      %s43 = sphi 0, %s42
      %s59 = sphi 0, %s43
      %s63 = sphi 0, %s63
      %s65 = sphi 0, %s63
      %s66 = sphi 0, %s65
      %s80 = sphi 0, %s66
      %s84 = sphi 0, %s84
      %s86 = sphi 0, %s84
      %s87 = sphi 0, %s86
      %s101 = sphi 0, %s87
      %s105 = sphi 0, %s105
      %s107 = sphi 0, %s105
      %s108 = sphi 0, %s107
      %s122 = sphi 0, %s108
      %s126 = sphi 0, %s126
      %s128 = sphi 0, %s126
      %s129 = sphi 0, %s128
      %s143 = sphi 0, %s129
      %s147 = sphi 0, %s147
      %s149 = sphi 0, %s147
      %s150 = sphi 0, %s149
      %s164 = sphi 0, %s150
      %s168 = sphi 0, %s168
      %s170 = sphi 0, %s168
      %s171 = sphi 0, %s170
      %s185 = sphi 0, %s171
      %s189 = sphi 0, %s189
      %s191 = sphi 0, %s189
      %s192 = sphi 0, %s191
      %s206 = sphi 0, %s192
      %s210 = sphi 0, %s210
      %s212 = sphi 0, %s210
      %s213 = sphi 0, %s212
      %s227 = sphi 0, %s213
      %s231 = sphi 0, %s231
      %s233 = sphi 0, %s231
      %s234 = sphi 0, %s233
      %s248 = sphi 0, %s234
      %s252 = sphi 0, %s252
      %s254 = sphi 0, %s252
      %s255 = sphi 0, %s254
      %s269 = sphi 0, %s255
      %s273 = sphi 0, %s273
      %s275 = sphi 0, %s273
      %s276 = sphi 0, %s275
      %s290 = sphi 0, %s276
      %s294 = sphi 0, %s294
      %s296 = sphi 0, %s294
      %s297 = sphi 0, %s296
      %s311 = sphi 0, %s297
      %s315 = sphi 0, %s315
      %s317 = sphi 0, %s315
      %s318 = sphi 0, %s317
      %s332 = sphi 0, %s318
      %s336 = sphi 0, %s336
      %s338 = sphi 0, %s336
      %s339 = sphi 0, %s338
      %s353 = sphi 0, %s339
      %s359 = sphi 0, %s361
      %s362 = sphi 0, %s359
      %s363 = sphi 0, %s362
      %s379 = sphi 0, %s363
    $region4: #{tpu_custom_call.1} parent=1 // loop_header_branch
      %32 = sbr.rel (%p30) target = $region8
    $region5: #{tpu_custom_call.1} parent=1 // loop_body
      %s34 = ssub.s32 %s29, 1
      %s35 = ssub.s32 %s29, 2
      %s36 = sadd.s32 %s29, 1
      %s37 = ssub.s32 %s29, %s36
      %p38 = scmp.eq.s32.totalorder %s37, 0
      %s40 = sadd.s32 %s39, 1
      %s41 = scalar_select %p38, %s39, %s40
      %p44 = pneg %p38
      %p45 = scmp.eq.s32.totalorder %s29, 1
      %p46 = por %p44, %p45
      %p47 = scmp.ne.s32.totalorder %s39, %s42
      %p48 = scmp.eq.s32.totalorder %s29, 0
      %p49 = por %p47, %p48
      %p50 = scmp.ne.s32.totalorder %s39, %s42
      %p51 = scmp.eq.s32.totalorder %s34, 1
      %p52 = por %p50, %p51
      %p53 = scmp.ne.s32.totalorder %s42, %s43
      %p54 = scmp.eq.s32.totalorder %s34, 0
      %p55 = por %p53, %p54
      %p56 = scmp.ne.s32.totalorder %s42, %s43
      %p57 = scmp.eq.s32.totalorder %s35, 1
      %p58 = por %p56, %p57
      %p60 = scmp.ne.s32.totalorder %s43, %s59
      %p61 = scmp.eq.s32.totalorder %s35, 0
      %p62 = por %p60, %p61
      %s64 = sadd.s32 %s63, 1
      %p67 = scmp.eq.s32.totalorder %s29, 1
      %p68 = scmp.ne.s32.totalorder %s63, %s65
      %p69 = scmp.eq.s32.totalorder %s29, 0
      %p70 = por %p68, %p69
      %p71 = scmp.ne.s32.totalorder %s63, %s65
      %p72 = scmp.eq.s32.totalorder %s34, 1
      %p73 = por %p71, %p72
      %p74 = scmp.ne.s32.totalorder %s65, %s66
      %p75 = scmp.eq.s32.totalorder %s34, 0
      %p76 = por %p74, %p75
      %p77 = scmp.ne.s32.totalorder %s65, %s66
      %p78 = scmp.eq.s32.totalorder %s35, 1
      %p79 = por %p77, %p78
      %p81 = scmp.ne.s32.totalorder %s66, %s80
      %p82 = scmp.eq.s32.totalorder %s35, 0
      %p83 = por %p81, %p82
      %s85 = sadd.s32 %s84, 1
      %p88 = scmp.eq.s32.totalorder %s29, 1
      %p89 = scmp.ne.s32.totalorder %s84, %s86
      %p90 = scmp.eq.s32.totalorder %s29, 0
      %p91 = por %p89, %p90
      %p92 = scmp.ne.s32.totalorder %s84, %s86
      %p93 = scmp.eq.s32.totalorder %s34, 1
      %p94 = por %p92, %p93
      %p95 = scmp.ne.s32.totalorder %s86, %s87
      %p96 = scmp.eq.s32.totalorder %s34, 0
      %p97 = por %p95, %p96
      %p98 = scmp.ne.s32.totalorder %s86, %s87
      %p99 = scmp.eq.s32.totalorder %s35, 1
      %p100 = por %p98, %p99
      %p102 = scmp.ne.s32.totalorder %s87, %s101
      %p103 = scmp.eq.s32.totalorder %s35, 0
      %p104 = por %p102, %p103
      %s106 = sadd.s32 %s105, 1
      %p109 = scmp.eq.s32.totalorder %s29, 1
      %p110 = scmp.ne.s32.totalorder %s105, %s107
      %p111 = scmp.eq.s32.totalorder %s29, 0
      %p112 = por %p110, %p111
      %p113 = scmp.ne.s32.totalorder %s105, %s107
      %p114 = scmp.eq.s32.totalorder %s34, 1
      %p115 = por %p113, %p114
      %p116 = scmp.ne.s32.totalorder %s107, %s108
      %p117 = scmp.eq.s32.totalorder %s34, 0
      %p118 = por %p116, %p117
      %p119 = scmp.ne.s32.totalorder %s107, %s108
      %p120 = scmp.eq.s32.totalorder %s35, 1
      %p121 = por %p119, %p120
      %p123 = scmp.ne.s32.totalorder %s108, %s122
      %p124 = scmp.eq.s32.totalorder %s35, 0
      %p125 = por %p123, %p124
      %s127 = sadd.s32 %s126, 1
      %p130 = scmp.eq.s32.totalorder %s29, 1
      %p131 = scmp.ne.s32.totalorder %s126, %s128
      %p132 = scmp.eq.s32.totalorder %s29, 0
      %p133 = por %p131, %p132
      %p134 = scmp.ne.s32.totalorder %s126, %s128
      %p135 = scmp.eq.s32.totalorder %s34, 1
      %p136 = por %p134, %p135
      %p137 = scmp.ne.s32.totalorder %s128, %s129
      %p138 = scmp.eq.s32.totalorder %s34, 0
      %p139 = por %p137, %p138
      %p140 = scmp.ne.s32.totalorder %s128, %s129
      %p141 = scmp.eq.s32.totalorder %s35, 1
      %p142 = por %p140, %p141
      %p144 = scmp.ne.s32.totalorder %s129, %s143
      %p145 = scmp.eq.s32.totalorder %s35, 0
      %p146 = por %p144, %p145
      %s148 = sadd.s32 %s147, 1
      %p151 = scmp.eq.s32.totalorder %s29, 1
      %p152 = scmp.ne.s32.totalorder %s147, %s149
      %p153 = scmp.eq.s32.totalorder %s29, 0
      %p154 = por %p152, %p153
      %p155 = scmp.ne.s32.totalorder %s147, %s149
      %p156 = scmp.eq.s32.totalorder %s34, 1
      %p157 = por %p155, %p156
      %p158 = scmp.ne.s32.totalorder %s149, %s150
      %p159 = scmp.eq.s32.totalorder %s34, 0
      %p160 = por %p158, %p159
      %p161 = scmp.ne.s32.totalorder %s149, %s150
      %p162 = scmp.eq.s32.totalorder %s35, 1
      %p163 = por %p161, %p162
      %p165 = scmp.ne.s32.totalorder %s150, %s164
      %p166 = scmp.eq.s32.totalorder %s35, 0
      %p167 = por %p165, %p166
      %s169 = sadd.s32 %s168, 1
      %p172 = scmp.eq.s32.totalorder %s29, 1
      %p173 = scmp.ne.s32.totalorder %s168, %s170
      %p174 = scmp.eq.s32.totalorder %s29, 0
      %p175 = por %p173, %p174
      %p176 = scmp.ne.s32.totalorder %s168, %s170
      %p177 = scmp.eq.s32.totalorder %s34, 1
      %p178 = por %p176, %p177
      %p179 = scmp.ne.s32.totalorder %s170, %s171
      %p180 = scmp.eq.s32.totalorder %s34, 0
      %p181 = por %p179, %p180
      %p182 = scmp.ne.s32.totalorder %s170, %s171
      %p183 = scmp.eq.s32.totalorder %s35, 1
      %p184 = por %p182, %p183
      %p186 = scmp.ne.s32.totalorder %s171, %s185
      %p187 = scmp.eq.s32.totalorder %s35, 0
      %p188 = por %p186, %p187
      %s190 = sadd.s32 %s189, 1
      %p193 = scmp.eq.s32.totalorder %s29, 1
      %p194 = scmp.ne.s32.totalorder %s189, %s191
      %p195 = scmp.eq.s32.totalorder %s29, 0
      %p196 = por %p194, %p195
      %p197 = scmp.ne.s32.totalorder %s189, %s191
      %p198 = scmp.eq.s32.totalorder %s34, 1
      %p199 = por %p197, %p198
      %p200 = scmp.ne.s32.totalorder %s191, %s192
      %p201 = scmp.eq.s32.totalorder %s34, 0
      %p202 = por %p200, %p201
      %p203 = scmp.ne.s32.totalorder %s191, %s192
      %p204 = scmp.eq.s32.totalorder %s35, 1
      %p205 = por %p203, %p204
      %p207 = scmp.ne.s32.totalorder %s192, %s206
      %p208 = scmp.eq.s32.totalorder %s35, 0
      %p209 = por %p207, %p208
      %s211 = sadd.s32 %s210, 1
      %p214 = scmp.eq.s32.totalorder %s29, 1
      %p215 = scmp.ne.s32.totalorder %s210, %s212
      %p216 = scmp.eq.s32.totalorder %s29, 0
      %p217 = por %p215, %p216
      %p218 = scmp.ne.s32.totalorder %s210, %s212
      %p219 = scmp.eq.s32.totalorder %s34, 1
      %p220 = por %p218, %p219
      %p221 = scmp.ne.s32.totalorder %s212, %s213
      %p222 = scmp.eq.s32.totalorder %s34, 0
      %p223 = por %p221, %p222
      %p224 = scmp.ne.s32.totalorder %s212, %s213
      %p225 = scmp.eq.s32.totalorder %s35, 1
      %p226 = por %p224, %p225
      %p228 = scmp.ne.s32.totalorder %s213, %s227
      %p229 = scmp.eq.s32.totalorder %s35, 0
      %p230 = por %p228, %p229
      %s232 = sadd.s32 %s231, 1
      %p235 = scmp.eq.s32.totalorder %s29, 1
      %p236 = scmp.ne.s32.totalorder %s231, %s233
      %p237 = scmp.eq.s32.totalorder %s29, 0
      %p238 = por %p236, %p237
      %p239 = scmp.ne.s32.totalorder %s231, %s233
      %p240 = scmp.eq.s32.totalorder %s34, 1
      %p241 = por %p239, %p240
      %p242 = scmp.ne.s32.totalorder %s233, %s234
      %p243 = scmp.eq.s32.totalorder %s34, 0
      %p244 = por %p242, %p243
      %p245 = scmp.ne.s32.totalorder %s233, %s234
      %p246 = scmp.eq.s32.totalorder %s35, 1
      %p247 = por %p245, %p246
      %p249 = scmp.ne.s32.totalorder %s234, %s248
      %p250 = scmp.eq.s32.totalorder %s35, 0
      %p251 = por %p249, %p250
      %s253 = sadd.s32 %s252, 1
      %p256 = scmp.eq.s32.totalorder %s29, 1
      %p257 = scmp.ne.s32.totalorder %s252, %s254
      %p258 = scmp.eq.s32.totalorder %s29, 0
      %p259 = por %p257, %p258
      %p260 = scmp.ne.s32.totalorder %s252, %s254
      %p261 = scmp.eq.s32.totalorder %s34, 1
      %p262 = por %p260, %p261
      %p263 = scmp.ne.s32.totalorder %s254, %s255
      %p264 = scmp.eq.s32.totalorder %s34, 0
      %p265 = por %p263, %p264
      %p266 = scmp.ne.s32.totalorder %s254, %s255
      %p267 = scmp.eq.s32.totalorder %s35, 1
      %p268 = por %p266, %p267
      %p270 = scmp.ne.s32.totalorder %s255, %s269
      %p271 = scmp.eq.s32.totalorder %s35, 0
      %p272 = por %p270, %p271
      %s274 = sadd.s32 %s273, 1
      %p277 = scmp.eq.s32.totalorder %s29, 1
      %p278 = scmp.ne.s32.totalorder %s273, %s275
      %p279 = scmp.eq.s32.totalorder %s29, 0
      %p280 = por %p278, %p279
      %p281 = scmp.ne.s32.totalorder %s273, %s275
      %p282 = scmp.eq.s32.totalorder %s34, 1
      %p283 = por %p281, %p282
      %p284 = scmp.ne.s32.totalorder %s275, %s276
      %p285 = scmp.eq.s32.totalorder %s34, 0
      %p286 = por %p284, %p285
      %p287 = scmp.ne.s32.totalorder %s275, %s276
      %p288 = scmp.eq.s32.totalorder %s35, 1
      %p289 = por %p287, %p288
      %p291 = scmp.ne.s32.totalorder %s276, %s290
      %p292 = scmp.eq.s32.totalorder %s35, 0
      %p293 = por %p291, %p292
      %s295 = sadd.s32 %s294, 1
      %p298 = scmp.eq.s32.totalorder %s29, 1
      %p299 = scmp.ne.s32.totalorder %s294, %s296
      %p300 = scmp.eq.s32.totalorder %s29, 0
      %p301 = por %p299, %p300
      %p302 = scmp.ne.s32.totalorder %s294, %s296
      %p303 = scmp.eq.s32.totalorder %s34, 1
      %p304 = por %p302, %p303
      %p305 = scmp.ne.s32.totalorder %s296, %s297
      %p306 = scmp.eq.s32.totalorder %s34, 0
      %p307 = por %p305, %p306
      %p308 = scmp.ne.s32.totalorder %s296, %s297
      %p309 = scmp.eq.s32.totalorder %s35, 1
      %p310 = por %p308, %p309
      %p312 = scmp.ne.s32.totalorder %s297, %s311
      %p313 = scmp.eq.s32.totalorder %s35, 0
      %p314 = por %p312, %p313
      %s316 = sadd.s32 %s315, 1
      %p319 = scmp.eq.s32.totalorder %s29, 1
      %p320 = scmp.ne.s32.totalorder %s315, %s317
      %p321 = scmp.eq.s32.totalorder %s29, 0
      %p322 = por %p320, %p321
      %p323 = scmp.ne.s32.totalorder %s315, %s317
      %p324 = scmp.eq.s32.totalorder %s34, 1
      %p325 = por %p323, %p324
      %p326 = scmp.ne.s32.totalorder %s317, %s318
      %p327 = scmp.eq.s32.totalorder %s34, 0
      %p328 = por %p326, %p327
      %p329 = scmp.ne.s32.totalorder %s317, %s318
      %p330 = scmp.eq.s32.totalorder %s35, 1
      %p331 = por %p329, %p330
      %p333 = scmp.ne.s32.totalorder %s318, %s332
      %p334 = scmp.eq.s32.totalorder %s35, 0
      %p335 = por %p333, %p334
      %s337 = sadd.s32 %s336, 1
      %p340 = scmp.eq.s32.totalorder %s29, 1
      %p341 = scmp.ne.s32.totalorder %s336, %s338
      %p342 = scmp.eq.s32.totalorder %s29, 0
      %p343 = por %p341, %p342
      %p344 = scmp.ne.s32.totalorder %s336, %s338
      %p345 = scmp.eq.s32.totalorder %s34, 1
      %p346 = por %p344, %p345
      %p347 = scmp.ne.s32.totalorder %s338, %s339
      %p348 = scmp.eq.s32.totalorder %s34, 0
      %p349 = por %p347, %p348
      %p350 = scmp.ne.s32.totalorder %s338, %s339
      %p351 = scmp.eq.s32.totalorder %s35, 1
      %p352 = por %p350, %p351
      %p354 = scmp.ne.s32.totalorder %s339, %s353
      %p355 = scmp.eq.s32.totalorder %s35, 0
      %p356 = por %p354, %p355
      %s357 = ssub.s32 %s29, %s36
      %p358 = scmp.eq.s32.totalorder %s357, 0
      %s360 = sadd.s32 %s359, 1
      %s361 = scalar_select %p358, %s359, %s360
      %p364 = pneg %p358
      %p365 = scmp.eq.s32.totalorder %s29, 1
      %p366 = por %p364, %p365
      %p367 = scmp.ne.s32.totalorder %s359, %s362
      %p368 = scmp.eq.s32.totalorder %s29, 0
      %p369 = por %p367, %p368
      %p370 = scmp.ne.s32.totalorder %s359, %s362
      %p371 = scmp.eq.s32.totalorder %s34, 1
      %p372 = por %p370, %p371
      %p373 = scmp.ne.s32.totalorder %s362, %s363
      %p374 = scmp.eq.s32.totalorder %s34, 0
      %p375 = por %p373, %p374
      %p376 = scmp.ne.s32.totalorder %s362, %s363
      %p377 = scmp.eq.s32.totalorder %s35, 1
      %p378 = por %p376, %p377
      %p380 = scmp.ne.s32.totalorder %s363, %s379
      %p381 = scmp.eq.s32.totalorder %s35, 0
      %p382 = por %p380, %p381
      %p383 = scmp.le.s32.totalorder 1, %s29
      %p384 = scmp.lt.s32.totalorder %s29, 3
      %p385 = pnand %p383, %p384
      %p386 = pneg %p385
      // Predicated region
      $region9: #{tpu_custom_call.1} parent=5 // pred_check
        _
      $region10: #{tpu_custom_call.1} parent=5 // pred_check_branch
        %388 = sbr.rel (%p385) target = $region12
      $region11: #{tpu_custom_call.1} parent=5 // pred_region
        %s389 = ssub.s32 %s29, 1
        // Predicated region
        $region13: #{tpu_custom_call.1} parent=11 // pred_check
          %p390 = pneg %p76
        $region14: #{tpu_custom_call.1} parent=11 // pred_check_branch
          %392 = sbr.rel (%p390) target = $region16
        $region15: #{tpu_custom_call.1} parent=11 // pred_region
          %s394 = ssub.s32 4096, 4096
          %395 = vsyncadd [#allocation3], %s394
          %s396 = sshll.u32 [#allocation2], 4
          %s397 = int_to_ptr.vmem [resolvable:$true] %s396
          %402 = dma.hbm_to_vmem [thread:$0]  %s1, 4096, %s397, [#allocation3], 128, 128, 8
        $region16: #{tpu_custom_call.1} parent=11 // pred_fallthru
          _
        // Predicated region
        $region17: #{tpu_custom_call.1} parent=11 // pred_check
          %p403 = pneg %p97
        $region18: #{tpu_custom_call.1} parent=11 // pred_check_branch
          %405 = sbr.rel (%p403) target = $region20
        $region19: #{tpu_custom_call.1} parent=11 // pred_region
          %s407 = ssub.s32 4096, 4096
          %408 = vsyncadd [#allocation6], %s407
          %s409 = sshll.u32 [#allocation5], 4
          %s410 = int_to_ptr.vmem [resolvable:$true] %s409
          %415 = dma.hbm_to_vmem [thread:$0]  %s2, 4096, %s410, [#allocation6], 256, 256, 16
        $region20: #{tpu_custom_call.1} parent=11 // pred_fallthru
          _
        // Predicated region
        $region21: #{tpu_custom_call.1} parent=11 // pred_check
          %p416 = pneg %p118
        $region22: #{tpu_custom_call.1} parent=11 // pred_check_branch
          %418 = sbr.rel (%p416) target = $region24
        $region23: #{tpu_custom_call.1} parent=11 // pred_region
          _
        $region24: #{tpu_custom_call.1} parent=11 // pred_fallthru
          _
        // Predicated region
        $region25: #{tpu_custom_call.1} parent=11 // pred_check
          %p419 = pneg %p139
        $region26: #{tpu_custom_call.1} parent=11 // pred_check_branch
          %421 = sbr.rel (%p419) target = $region28
        $region27: #{tpu_custom_call.1} parent=11 // pred_region
          %s423 = ssub.s32 6144, 6144
          %424 = vsyncadd [#allocation6], %s423
          %s425 = sshll.u32 [#allocation7], 4
          %s426 = int_to_ptr.vmem [resolvable:$true] %s425
          %431 = dma.hbm_to_vmem [thread:$0]  %s4, 6144, %s426, [#allocation6], 128, 128, 8
        $region28: #{tpu_custom_call.1} parent=11 // pred_fallthru
          _
        // Predicated region
        $region29: #{tpu_custom_call.1} parent=11 // pred_check
          %p432 = pneg %p160
        $region30: #{tpu_custom_call.1} parent=11 // pred_check_branch
          %434 = sbr.rel (%p432) target = $region32
        $region31: #{tpu_custom_call.1} parent=11 // pred_region
          _
        $region32: #{tpu_custom_call.1} parent=11 // pred_fallthru
          _
        // Predicated region
        $region33: #{tpu_custom_call.1} parent=11 // pred_check
          %p435 = pneg %p181
        $region34: #{tpu_custom_call.1} parent=11 // pred_check_branch
          %437 = sbr.rel (%p435) target = $region36
        $region35: #{tpu_custom_call.1} parent=11 // pred_region
          %s439 = ssub.s32 4096, 4096
          %440 = vsyncadd [#allocation9], %s439
          %s441 = sshll.u32 [#allocation8], 4
          %s442 = int_to_ptr.vmem [resolvable:$true] %s441
          %447 = dma.hbm_to_vmem [thread:$0]  %s6, 4096, %s442, [#allocation9], 128, 128, 8
        $region36: #{tpu_custom_call.1} parent=11 // pred_fallthru
          _
        // Predicated region
        $region37: #{tpu_custom_call.1} parent=11 // pred_check
          %p448 = pneg %p202
        $region38: #{tpu_custom_call.1} parent=11 // pred_check_branch
          %450 = sbr.rel (%p448) target = $region40
        $region39: #{tpu_custom_call.1} parent=11 // pred_region
          %s452 = ssub.s32 4096, 4096
          %453 = vsyncadd [#allocation9], %s452
          %s454 = sshll.u32 [#allocation10], 4
          %s455 = int_to_ptr.vmem [resolvable:$true] %s454
          %460 = dma.hbm_to_vmem [thread:$0]  %s7, 4096, %s455, [#allocation9], 256, 256, 16
        $region40: #{tpu_custom_call.1} parent=11 // pred_fallthru
          _
        // Predicated region
        $region41: #{tpu_custom_call.1} parent=11 // pred_check
          %p461 = pneg %p223
        $region42: #{tpu_custom_call.1} parent=11 // pred_check_branch
          %463 = sbr.rel (%p461) target = $region44
        $region43: #{tpu_custom_call.1} parent=11 // pred_region
          _
        $region44: #{tpu_custom_call.1} parent=11 // pred_fallthru
          _
        // Predicated region
        $region45: #{tpu_custom_call.1} parent=11 // pred_check
          %p464 = pneg %p244
        $region46: #{tpu_custom_call.1} parent=11 // pred_check_branch
          %466 = sbr.rel (%p464) target = $region48
        $region47: #{tpu_custom_call.1} parent=11 // pred_region
          %s468 = ssub.s32 6144, 6144
          %469 = vsyncadd [#allocation12], %s468
          %s470 = sshll.u32 [#allocation11], 4
          %s471 = int_to_ptr.vmem [resolvable:$true] %s470
          %476 = dma.hbm_to_vmem [thread:$0]  %s9, 6144, %s471, [#allocation12], 128, 128, 8
        $region48: #{tpu_custom_call.1} parent=11 // pred_fallthru
          _
        // Predicated region
        $region49: #{tpu_custom_call.1} parent=11 // pred_check
          %p477 = pneg %p265
        $region50: #{tpu_custom_call.1} parent=11 // pred_check_branch
          %479 = sbr.rel (%p477) target = $region52
        $region51: #{tpu_custom_call.1} parent=11 // pred_region
          _
        $region52: #{tpu_custom_call.1} parent=11 // pred_fallthru
          _
        // Predicated region
        $region53: #{tpu_custom_call.1} parent=11 // pred_check
          %p480 = pneg %p286
        $region54: #{tpu_custom_call.1} parent=11 // pred_check_branch
          %482 = sbr.rel (%p480) target = $region56
        $region55: #{tpu_custom_call.1} parent=11 // pred_region
          %s484 = ssub.s32 2048, 2048
          %485 = vsyncadd [#allocation12], %s484
          %s486 = sshll.u32 [#allocation13], 4
          %s487 = int_to_ptr.vmem [resolvable:$true] %s486
          %492 = dma.hbm_to_vmem [thread:$0]  %s11, 2048, %s487, [#allocation12], 128, 128, 8
        $region56: #{tpu_custom_call.1} parent=11 // pred_fallthru
          _
        // Predicated region
        $region57: #{tpu_custom_call.1} parent=11 // pred_check
          %p493 = pneg %p307
        $region58: #{tpu_custom_call.1} parent=11 // pred_check_branch
          %495 = sbr.rel (%p493) target = $region60
        $region59: #{tpu_custom_call.1} parent=11 // pred_region
          _
        $region60: #{tpu_custom_call.1} parent=11 // pred_fallthru
          _
        // Predicated region
        $region61: #{tpu_custom_call.1} parent=11 // pred_check
          %p496 = pneg %p328
        $region62: #{tpu_custom_call.1} parent=11 // pred_check_branch
          %498 = sbr.rel (%p496) target = $region64
        $region63: #{tpu_custom_call.1} parent=11 // pred_region
          %s500 = ssub.s32 2048, 2048
          %501 = vsyncadd [#allocation15], %s500
          %s502 = sshll.u32 [#allocation14], 4
          %s503 = int_to_ptr.vmem [resolvable:$true] %s502
          %508 = dma.hbm_to_vmem [thread:$0]  %s13, 2048, %s503, [#allocation15], 128, 128, 8
        $region64: #{tpu_custom_call.1} parent=11 // pred_fallthru
          _
        // Predicated region
        $region65: #{tpu_custom_call.1} parent=11 // pred_check
          %p509 = pneg %p349
        $region66: #{tpu_custom_call.1} parent=11 // pred_check_branch
          %511 = sbr.rel (%p509) target = $region68
        $region67: #{tpu_custom_call.1} parent=11 // pred_region
          _
        $region68: #{tpu_custom_call.1} parent=11 // pred_fallthru
          _
      $region12: #{tpu_custom_call.1} parent=5 // pred_fallthru
        _
      %p512 = scmp.lt.s32.totalorder %s29, 2
      // Predicated region
      $region69: #{tpu_custom_call.1} parent=5 // pred_check
        %p513 = pneg %p512
      $region70: #{tpu_custom_call.1} parent=5 // pred_check_branch
        %515 = sbr.rel (%p513) target = $region72
      $region71: #{tpu_custom_call.1} parent=5 // pred_region
        // Predicated region
        $region73: #{tpu_custom_call.1} parent=71 // pred_check
          %p516 = pneg %p49
        $region74: #{tpu_custom_call.1} parent=71 // pred_check_branch
          %518 = sbr.rel (%p516) target = $region76
        $region75: #{tpu_custom_call.1} parent=71 // pred_region
          %p519 = scmp.lt.s32.totalorder %s29, 1
          %s520 = scalar_select %p519, %s29, 1
          %s521 = smul.addr %s520, 2
          %s522 = smul.addr %s521, 8
          %s523 = scalar_lea.vmem %s0, %s522
        $region76: #{tpu_custom_call.1} parent=71 // pred_fallthru
          _
      $region72: #{tpu_custom_call.1} parent=5 // pred_fallthru
        _
      %p524 = scmp.le.s32.totalorder 1, %s29
      %p525 = scmp.lt.s32.totalorder %s29, 3
      %p526 = pnand %p524, %p525
      %p527 = pneg %p526
      // Predicated region
      $region77: #{tpu_custom_call.1} parent=5 // pred_check
        _
      $region78: #{tpu_custom_call.1} parent=5 // pred_check_branch
        %529 = sbr.rel (%p526) target = $region80
      $region79: #{tpu_custom_call.1} parent=5 // pred_region
        %s530 = ssub.s32 %s29, 1
        // Predicated region
        $region81: #{tpu_custom_call.1} parent=79 // pred_check
          %p531 = pneg %p76
        $region82: #{tpu_custom_call.1} parent=79 // pred_check_branch
          %533 = sbr.rel (%p531) target = $region84
        $region83: #{tpu_custom_call.1} parent=79 // pred_region
          %534 = dma.done [#allocation3], 4096
        $region84: #{tpu_custom_call.1} parent=79 // pred_fallthru
          _
        // Predicated region
        $region85: #{tpu_custom_call.1} parent=79 // pred_check
          %p535 = pneg %p97
        $region86: #{tpu_custom_call.1} parent=79 // pred_check_branch
          %537 = sbr.rel (%p535) target = $region88
        $region87: #{tpu_custom_call.1} parent=79 // pred_region
          %538 = dma.done [#allocation6], 4096
        $region88: #{tpu_custom_call.1} parent=79 // pred_fallthru
          _
        // Predicated region
        $region89: #{tpu_custom_call.1} parent=79 // pred_check
          %p539 = pneg %p139
        $region90: #{tpu_custom_call.1} parent=79 // pred_check_branch
          %541 = sbr.rel (%p539) target = $region92
        $region91: #{tpu_custom_call.1} parent=79 // pred_region
          %542 = dma.done [#allocation6], 6144
        $region92: #{tpu_custom_call.1} parent=79 // pred_fallthru
          _
        // Predicated region
        $region93: #{tpu_custom_call.1} parent=79 // pred_check
          %p543 = pneg %p181
        $region94: #{tpu_custom_call.1} parent=79 // pred_check_branch
          %545 = sbr.rel (%p543) target = $region96
        $region95: #{tpu_custom_call.1} parent=79 // pred_region
          %546 = dma.done [#allocation9], 4096
        $region96: #{tpu_custom_call.1} parent=79 // pred_fallthru
          _
        // Predicated region
        $region97: #{tpu_custom_call.1} parent=79 // pred_check
          %p547 = pneg %p202
        $region98: #{tpu_custom_call.1} parent=79 // pred_check_branch
          %549 = sbr.rel (%p547) target = $region100
        $region99: #{tpu_custom_call.1} parent=79 // pred_region
          %550 = dma.done [#allocation9], 4096
        $region100: #{tpu_custom_call.1} parent=79 // pred_fallthru
          _
        // Predicated region
        $region101: #{tpu_custom_call.1} parent=79 // pred_check
          %p551 = pneg %p244
        $region102: #{tpu_custom_call.1} parent=79 // pred_check_branch
          %553 = sbr.rel (%p551) target = $region104
        $region103: #{tpu_custom_call.1} parent=79 // pred_region
          %554 = dma.done [#allocation12], 6144
        $region104: #{tpu_custom_call.1} parent=79 // pred_fallthru
          _
        // Predicated region
        $region105: #{tpu_custom_call.1} parent=79 // pred_check
          %p555 = pneg %p286
        $region106: #{tpu_custom_call.1} parent=79 // pred_check_branch
          %557 = sbr.rel (%p555) target = $region108
        $region107: #{tpu_custom_call.1} parent=79 // pred_region
          %558 = dma.done [#allocation12], 2048
        $region108: #{tpu_custom_call.1} parent=79 // pred_fallthru
          _
        // Predicated region
        $region109: #{tpu_custom_call.1} parent=79 // pred_check
          %p559 = pneg %p328
        $region110: #{tpu_custom_call.1} parent=79 // pred_check_branch
          %561 = sbr.rel (%p559) target = $region112
        $region111: #{tpu_custom_call.1} parent=79 // pred_region
          %562 = dma.done [#allocation15], 2048
        $region112: #{tpu_custom_call.1} parent=79 // pred_fallthru
          _
        %p563 = scmp.lt.s32.totalorder %s34, 1
        %s564 = scalar_select %p563, %s34, 1
        %s565 = smul.addr %s564, 2
        %s566 = smul.addr %s565, 8
        %s567 = scalar_lea.vmem %s0, %s566
        %p568 = pneg %p55
        %p569 = pneg %p52
        %p570 = pneg %p76
        %p571 = pneg %p73
        %p572 = pneg %p97
        %p573 = pneg %p94
        %p574 = pneg %p118
        %p575 = pneg %p115
        %p576 = pneg %p139
        %p577 = pneg %p136
        %p578 = pneg %p160
        %p579 = pneg %p157
        %p580 = pneg %p181
        %p581 = pneg %p178
        %p582 = pneg %p202
        %p583 = pneg %p199
        %p584 = pneg %p223
        %p585 = pneg %p220
        %p586 = pneg %p244
        %p587 = pneg %p241
        %p588 = pneg %p265
        %p589 = pneg %p262
        %p590 = pneg %p286
        %p591 = pneg %p283
        %p592 = pneg %p307
        %p593 = pneg %p304
        %p594 = pneg %p328
        %p595 = pneg %p325
        %p596 = pneg %p349
        %p597 = pneg %p346
        %p598 = pneg %p375
        %p599 = pneg %p372
        %s600 = sand.u32 %s362, 1
        %s601 = scalar_lea.sflag [#allocation4], %s600
        %s602 = sand.u32 %s362, 1
        %s603 = scalar_lea.vmem [#allocation16], %s602
        %p604 = scmp.lt.s32.totalorder %s34, 1
        %s605 = scalar_select %p604, %s34, 1
        %s606 = smul.addr %s605, 2
        %s607 = smul.addr %s606, 8
        %s608 = scalar_lea.vmem %s0, %s607
        %v609 = vld [vmem:[%s608] sm:$0xff]
        %v610 = vld [vmem:[%s608 + $0x8] sm:$0xff]
        %vm611 = vcmask 31744
        %v612 = vsel %vm611, %v609, 0.0
        %v613 = vsel %vm611, %v610, 0.0
        %v614 = vld [vmem:[#allocation5] sm:$0xff]
        %v615 = vld [vmem:[#allocation5 + $0x8] sm:$0xff]
        %v616 = vld [vmem:[#allocation5 + $0x10] sm:$0xff]
        %v617 = vld [vmem:[#allocation5 + $0x18] sm:$0xff]
        %v618 = vld [vmem:[#allocation5 + $0x20] sm:$0xff]
        %v619 = vld [vmem:[#allocation5 + $0x28] sm:$0xff]
        %v620 = vld [vmem:[#allocation5 + $0x30] sm:$0xff]
        %v621 = vld [vmem:[#allocation5 + $0x38] sm:$0xff]
        %v622 = vld [vmem:[#allocation5 + $0x40] sm:$0xff]
        %v623 = vld [vmem:[#allocation5 + $0x48] sm:$0xff]
        %v624 = vld [vmem:[#allocation5 + $0x50] sm:$0xff]
        %v625 = vld [vmem:[#allocation5 + $0x58] sm:$0xff]
        %v626 = vld [vmem:[#allocation5 + $0x60] sm:$0xff]
        %v627 = vld [vmem:[#allocation5 + $0x68] sm:$0xff]
        %v628 = vld [vmem:[#allocation5 + $0x70] sm:$0xff]
        %v629 = vld [vmem:[#allocation5 + $0x78] sm:$0xff]
        %v630 = vld [vmem:[#allocation5 + $0x80] sm:$0xff]
        %v631 = vld [vmem:[#allocation5 + $0x88] sm:$0xff]
        %v632 = vld [vmem:[#allocation5 + $0x90] sm:$0xff]
        %v633 = vld [vmem:[#allocation5 + $0x98] sm:$0xff]
        %v634 = vld [vmem:[#allocation5 + $0xa0] sm:$0xff]
        %v635 = vld [vmem:[#allocation5 + $0xa8] sm:$0xff]
        %v636 = vld [vmem:[#allocation5 + $0xb0] sm:$0xff]
        %v637 = vld [vmem:[#allocation5 + $0xb8] sm:$0xff]
        %v638 = vld [vmem:[#allocation5 + $0xc0] sm:$0xff]
        %v639 = vld [vmem:[#allocation5 + $0xc8] sm:$0xff]
        %v640 = vld [vmem:[#allocation5 + $0xd0] sm:$0xff]
        %v641 = vld [vmem:[#allocation5 + $0xd8] sm:$0xff]
        %v642 = vld [vmem:[#allocation5 + $0xe0] sm:$0xff]
        %v643 = vld [vmem:[#allocation5 + $0xe8] sm:$0xff]
        %v644 = vld [vmem:[#allocation5 + $0xf0] sm:$0xff]
        %v645 = vld [vmem:[#allocation5 + $0xf8] sm:$0xff]
        %v646 = vld [vmem:[%s3] sm:$0x3]
        %v648 = vlaneseq
        %v649 = vshrl.u32 %v648, 7
        %v650 = vsub.s32 0, %v649
        %v651 = vrot.slane %v646, %v650
        %v652 = vlaneseq
        %v653 = vshrl.u32 %v652, 7
        %v654 = vsub.s32 1, %v653
        %v655 = vrot.slane %v646, %v654
        %658 = vmatprep.subr.mxu0 %v645
        %659 = vmatpush1.msra.mxu0 %v644
        %660 = vmatprep.subr.mxu0 %v643
        %661 = vmatpush1.msra.mxu0 %v642
        %662 = vmatprep.subr.mxu0 %v641
        %663 = vmatpush1.msra.mxu0 %v640
        %664 = vmatprep.subr.mxu0 %v639
        %665 = vmatpush1.msra.mxu0 %v638
        %666 = vmatprep.subr.mxu0 %v637
        %667 = vmatpush1.msra.mxu0 %v636
        %668 = vmatprep.subr.mxu0 %v635
        %669 = vmatpush1.msra.mxu0 %v634
        %670 = vmatprep.subr.mxu0 %v633
        %671 = vmatpush1.msra.mxu0 %v632
        %672 = vmatprep.subr.mxu0 %v631
        %673 = vmatpush1.msra.mxu0 %v630
        %674 = vmatprep.subr.mxu0 %v629
        %675 = vmatpush1.msra.mxu0 %v628
        %676 = vmatprep.subr.mxu0 %v627
        %677 = vmatpush1.msra.mxu0 %v626
        %678 = vmatprep.subr.mxu0 %v625
        %679 = vmatpush1.msra.mxu0 %v624
        %680 = vmatprep.subr.mxu0 %v623
        %681 = vmatpush1.msra.mxu0 %v622
        %682 = vmatprep.subr.mxu0 %v621
        %683 = vmatpush1.msra.mxu0 %v620
        %684 = vmatprep.subr.mxu0 %v619
        %685 = vmatpush1.msra.mxu0 %v618
        %686 = vmatprep.subr.mxu0 %v617
        %687 = vmatpush1.msra.mxu0 %v616
        %688 = vmatprep.subr.mxu0 %v615
        %689 = vmatpush1.msra.mxu0 %v614
        %690 = vmatprep.subr.mxu0 0.0
        %691 = vmatpush2.msra.mxu0 0.0
        %692 = vmatprep.subr.mxu0 0.0
        %693 = vmatpush2.msra.mxu0 0.0
        %694 = vmatprep.subr.mxu0 0.0
        %695 = vmatpush2.msra.mxu0 0.0
        %696 = vmatprep.subr.mxu0 0.0
        %697 = vmatpush2.msra.mxu0 0.0
        %698 = vmatprep.subr.mxu0 0.0
        %699 = vmatpush2.msra.mxu0 0.0
        %700 = vmatprep.subr.mxu0 0.0
        %701 = vmatpush2.msra.mxu0 0.0
        %702 = vmatprep.subr.mxu0 0.0
        %703 = vmatpush2.msra.mxu0 0.0
        %704 = vmatprep.subr.mxu0 0.0
        %705 = vmatpush2.msra.mxu0 0.0
        %706 = vmatprep.subr.mxu0 0.0
        %707 = vmatpush2.msra.mxu0 0.0
        %708 = vmatprep.subr.mxu0 0.0
        %709 = vmatpush2.msra.mxu0 0.0
        %710 = vmatprep.subr.mxu0 0.0
        %711 = vmatpush2.msra.mxu0 0.0
        %712 = vmatprep.subr.mxu0 0.0
        %713 = vmatpush2.msra.mxu0 0.0
        %714 = vmatprep.subr.mxu0 0.0
        %715 = vmatpush2.msra.mxu0 0.0
        %716 = vmatprep.subr.mxu0 0.0
        %717 = vmatpush2.msra.mxu0 0.0
        %718 = vmatprep.subr.mxu0 0.0
        %719 = vmatpush2.msra.mxu0 0.0
        %720 = vmatprep.subr.mxu0 0.0
        %721 = vmatpush2.msra.mxu0 0.0
        %722 = vmatprep.mubr.f32.mxu0 0.0
        %723 = vmatmul.mubr.f32.gmra.mxu0 %v612
        %v724 = vpop.f32.mrf.mxu0
        %v725 = vadd.f32 %v651, %v724
        %v726 = vpop.f32.mrf.mxu0
        %v727 = vadd.f32 %v655, %v726
        %728 = vmatprep.mubr.f32.mxu0 0.0
        %729 = vmatmul.mubr.f32.gmra.mxu0 %v613
        %v730 = vpop.f32.mrf.mxu0
        %v731 = vadd.f32 %v651, %v730
        %v732 = vpop.f32.mrf.mxu0
        %v733 = vadd.f32 %v655, %v732
        %734 = vdwg.mxu0
        %vm737 = vcmask 1041408
        %v738 = vrot.slane %v612, 6
        %v739 = vrot.slane %v613, 6
        %v740 = vsel %vm737, %v738, %v739
        %v743 = vsel %vm737, 0.0, %v738
        %v744 = vld [vmem:[#allocation2] sm:$0xff]
        %v745 = vld [vmem:[#allocation2 + $0x8] sm:$0xff]
        %v746 = vld [vmem:[#allocation2 + $0x10] sm:$0xff]
        %v747 = vld [vmem:[#allocation2 + $0x18] sm:$0xff]
        %v748 = vld [vmem:[#allocation2 + $0x20] sm:$0xff]
        %v749 = vld [vmem:[#allocation2 + $0x28] sm:$0xff]
        %v750 = vld [vmem:[#allocation2 + $0x30] sm:$0xff]
        %v751 = vld [vmem:[#allocation2 + $0x38] sm:$0xff]
        %v752 = vld [vmem:[#allocation2 + $0x40] sm:$0xff]
        %v753 = vld [vmem:[#allocation2 + $0x48] sm:$0xff]
        %v754 = vld [vmem:[#allocation2 + $0x50] sm:$0xff]
        %v755 = vld [vmem:[#allocation2 + $0x58] sm:$0xff]
        %v756 = vld [vmem:[#allocation2 + $0x60] sm:$0xff]
        %v757 = vld [vmem:[#allocation2 + $0x68] sm:$0xff]
        %v758 = vld [vmem:[#allocation2 + $0x70] sm:$0xff]
        %v759 = vld [vmem:[#allocation2 + $0x78] sm:$0xff]
        %760 = vmatprep.subr.mxu0 0.0
        %761 = vmatpush1.msra.mxu0 %v759
        %762 = vmatprep.subr.mxu0 0.0
        %763 = vmatpush1.msra.mxu0 %v758
        %764 = vmatprep.subr.mxu0 0.0
        %765 = vmatpush1.msra.mxu0 %v757
        %766 = vmatprep.subr.mxu0 0.0
        %767 = vmatpush1.msra.mxu0 %v756
        %768 = vmatprep.subr.mxu0 0.0
        %769 = vmatpush1.msra.mxu0 %v755
        %770 = vmatprep.subr.mxu0 0.0
        %771 = vmatpush1.msra.mxu0 %v754
        %772 = vmatprep.subr.mxu0 0.0
        %773 = vmatpush1.msra.mxu0 %v753
        %774 = vmatprep.subr.mxu0 0.0
        %775 = vmatpush1.msra.mxu0 %v752
        %776 = vmatprep.subr.mxu0 0.0
        %777 = vmatpush1.msra.mxu0 %v751
        %778 = vmatprep.subr.mxu0 0.0
        %779 = vmatpush1.msra.mxu0 %v750
        %780 = vmatprep.subr.mxu0 0.0
        %781 = vmatpush1.msra.mxu0 %v749
        %782 = vmatprep.subr.mxu0 0.0
        %783 = vmatpush1.msra.mxu0 %v748
        %784 = vmatprep.subr.mxu0 0.0
        %785 = vmatpush1.msra.mxu0 %v747
        %786 = vmatprep.subr.mxu0 0.0
        %787 = vmatpush1.msra.mxu0 %v746
        %788 = vmatprep.subr.mxu0 0.0
        %789 = vmatpush1.msra.mxu0 %v745
        %790 = vmatprep.subr.mxu0 0.0
        %791 = vmatpush1.msra.mxu0 %v744
        %792 = vmatprep.subr.mxu0 0.0
        %793 = vmatpush2.msra.mxu0 0.0
        %794 = vmatprep.subr.mxu0 0.0
        %795 = vmatpush2.msra.mxu0 0.0
        %796 = vmatprep.subr.mxu0 0.0
        %797 = vmatpush2.msra.mxu0 0.0
        %798 = vmatprep.subr.mxu0 0.0
        %799 = vmatpush2.msra.mxu0 0.0
        %800 = vmatprep.subr.mxu0 0.0
        %801 = vmatpush2.msra.mxu0 0.0
        %802 = vmatprep.subr.mxu0 0.0
        %803 = vmatpush2.msra.mxu0 0.0
        %804 = vmatprep.subr.mxu0 0.0
        %805 = vmatpush2.msra.mxu0 0.0
        %806 = vmatprep.subr.mxu0 0.0
        %807 = vmatpush2.msra.mxu0 0.0
        %808 = vmatprep.subr.mxu0 0.0
        %809 = vmatpush2.msra.mxu0 0.0
        %810 = vmatprep.subr.mxu0 0.0
        %811 = vmatpush2.msra.mxu0 0.0
        %812 = vmatprep.subr.mxu0 0.0
        %813 = vmatpush2.msra.mxu0 0.0
        %814 = vmatprep.subr.mxu0 0.0
        %815 = vmatpush2.msra.mxu0 0.0
        %816 = vmatprep.subr.mxu0 0.0
        %817 = vmatpush2.msra.mxu0 0.0
        %818 = vmatprep.subr.mxu0 0.0
        %819 = vmatpush2.msra.mxu0 0.0
        %820 = vmatprep.subr.mxu0 0.0
        %821 = vmatpush2.msra.mxu0 0.0
        %822 = vmatprep.subr.mxu0 0.0
        %823 = vmatpush2.msra.mxu0 0.0
        %824 = vmatprep.mubr.f32.mxu0 0.0
        %825 = vmatmul.mubr.f32.gmra.mxu0 %v743
        %v826 = vpop.f32.mrf.mxu0
        %v827 = vadd.f32 0.0, %v826
        %v828 = vpop.f32.mrf.mxu0
        %829 = vmatprep.mubr.f32.mxu0 0.0
        %830 = vmatmul.mubr.f32.gmra.mxu0 %v740
        %v831 = vpop.f32.mrf.mxu0
        %v832 = vadd.f32 0.0, %v831
        %v833 = vpop.f32.mrf.mxu0
        %834 = vdwg.mxu0
        %v835 = vadd.f32 %v725, %v827
        %v836 = vadd.f32 %v731, %v832
        %s837 = scalar_lea.vmem [#allocation2], 128
        %v838 = vld [vmem:[%s837] sm:$0xff]
        %v839 = vld [vmem:[%s837 + $0x8] sm:$0xff]
        %v840 = vld [vmem:[%s837 + $0x10] sm:$0xff]
        %v841 = vld [vmem:[%s837 + $0x18] sm:$0xff]
        %v842 = vld [vmem:[%s837 + $0x20] sm:$0xff]
        %v843 = vld [vmem:[%s837 + $0x28] sm:$0xff]
        %v844 = vld [vmem:[%s837 + $0x30] sm:$0xff]
        %v845 = vld [vmem:[%s837 + $0x38] sm:$0xff]
        %v846 = vld [vmem:[%s837 + $0x40] sm:$0xff]
        %v847 = vld [vmem:[%s837 + $0x48] sm:$0xff]
        %v848 = vld [vmem:[%s837 + $0x50] sm:$0xff]
        %v849 = vld [vmem:[%s837 + $0x58] sm:$0xff]
        %v850 = vld [vmem:[%s837 + $0x60] sm:$0xff]
        %v851 = vld [vmem:[%s837 + $0x68] sm:$0xff]
        %v852 = vld [vmem:[%s837 + $0x70] sm:$0xff]
        %v853 = vld [vmem:[%s837 + $0x78] sm:$0xff]
        %vm855 = vcmask 1046528
        %v856 = vrot.slane %v743, 1
        %v857 = vrot.slane %v740, 1
        %v858 = vsel %vm855, %v856, %v857
        %v859 = vrot.slane %v739, 1
        %v860 = vsel %vm855, %v857, %v859
        %863 = vmatprep.subr.mxu0 0.0
        %864 = vmatpush1.msra.mxu0 %v853
        %865 = vmatprep.subr.mxu0 0.0
        %866 = vmatpush1.msra.mxu0 %v852
        %867 = vmatprep.subr.mxu0 0.0
        %868 = vmatpush1.msra.mxu0 %v851
        %869 = vmatprep.subr.mxu0 0.0
        %870 = vmatpush1.msra.mxu0 %v850
        %871 = vmatprep.subr.mxu0 0.0
        %872 = vmatpush1.msra.mxu0 %v849
        %873 = vmatprep.subr.mxu0 0.0
        %874 = vmatpush1.msra.mxu0 %v848
        %875 = vmatprep.subr.mxu0 0.0
        %876 = vmatpush1.msra.mxu0 %v847
        %877 = vmatprep.subr.mxu0 0.0
        %878 = vmatpush1.msra.mxu0 %v846
        %879 = vmatprep.subr.mxu0 0.0
        %880 = vmatpush1.msra.mxu0 %v845
        %881 = vmatprep.subr.mxu0 0.0
        %882 = vmatpush1.msra.mxu0 %v844
        %883 = vmatprep.subr.mxu0 0.0
        %884 = vmatpush1.msra.mxu0 %v843
        %885 = vmatprep.subr.mxu0 0.0
        %886 = vmatpush1.msra.mxu0 %v842
        %887 = vmatprep.subr.mxu0 0.0
        %888 = vmatpush1.msra.mxu0 %v841
        %889 = vmatprep.subr.mxu0 0.0
        %890 = vmatpush1.msra.mxu0 %v840
        %891 = vmatprep.subr.mxu0 0.0
        %892 = vmatpush1.msra.mxu0 %v839
        %893 = vmatprep.subr.mxu0 0.0
        %894 = vmatpush1.msra.mxu0 %v838
        %895 = vmatprep.subr.mxu0 0.0
        %896 = vmatpush2.msra.mxu0 0.0
        %897 = vmatprep.subr.mxu0 0.0
        %898 = vmatpush2.msra.mxu0 0.0
        %899 = vmatprep.subr.mxu0 0.0
        %900 = vmatpush2.msra.mxu0 0.0
        %901 = vmatprep.subr.mxu0 0.0
        %902 = vmatpush2.msra.mxu0 0.0
        %903 = vmatprep.subr.mxu0 0.0
        %904 = vmatpush2.msra.mxu0 0.0
        %905 = vmatprep.subr.mxu0 0.0
        %906 = vmatpush2.msra.mxu0 0.0
        %907 = vmatprep.subr.mxu0 0.0
        %908 = vmatpush2.msra.mxu0 0.0
        %909 = vmatprep.subr.mxu0 0.0
        %910 = vmatpush2.msra.mxu0 0.0
        %911 = vmatprep.subr.mxu0 0.0
        %912 = vmatpush2.msra.mxu0 0.0
        %913 = vmatprep.subr.mxu0 0.0
        %914 = vmatpush2.msra.mxu0 0.0
        %915 = vmatprep.subr.mxu0 0.0
        %916 = vmatpush2.msra.mxu0 0.0
        %917 = vmatprep.subr.mxu0 0.0
        %918 = vmatpush2.msra.mxu0 0.0
        %919 = vmatprep.subr.mxu0 0.0
        %920 = vmatpush2.msra.mxu0 0.0
        %921 = vmatprep.subr.mxu0 0.0
        %922 = vmatpush2.msra.mxu0 0.0
        %923 = vmatprep.subr.mxu0 0.0
        %924 = vmatpush2.msra.mxu0 0.0
        %925 = vmatprep.subr.mxu0 0.0
        %926 = vmatpush2.msra.mxu0 0.0
        %927 = vmatprep.mubr.f32.mxu0 0.0
        %928 = vmatmul.mubr.f32.gmra.mxu0 %v858
        %v929 = vpop.f32.mrf.mxu0
        %v930 = vadd.f32 0.0, %v929
        %v931 = vpop.f32.mrf.mxu0
        %932 = vmatprep.mubr.f32.mxu0 0.0
        %933 = vmatmul.mubr.f32.gmra.mxu0 %v860
        %v934 = vpop.f32.mrf.mxu0
        %v935 = vadd.f32 0.0, %v934
        %v936 = vpop.f32.mrf.mxu0
        %937 = vdwg.mxu0
        %v938 = vadd.f32 %v835, %v930
        %v939 = vadd.f32 %v836, %v935
        %v940 = vmax.f32 %v938, 0.0
        %v941 = vmax.f32 %v939, 0.0
        %v944 = vrot.slane %v940, 6
        %v945 = vrot.slane %v941, 6
        %v946 = vsel %vm737, %v944, %v945
        %v949 = vsel %vm737, 0.0, %v944
        %v950 = vld [vmem:[#allocation7] sm:$0xff]
        %v951 = vld [vmem:[#allocation7 + $0x8] sm:$0xff]
        %v952 = vld [vmem:[#allocation7 + $0x10] sm:$0xff]
        %v953 = vld [vmem:[#allocation7 + $0x18] sm:$0xff]
        %v954 = vld [vmem:[#allocation7 + $0x20] sm:$0xff]
        %v955 = vld [vmem:[#allocation7 + $0x28] sm:$0xff]
        %v956 = vld [vmem:[#allocation7 + $0x30] sm:$0xff]
        %v957 = vld [vmem:[#allocation7 + $0x38] sm:$0xff]
        %v958 = vld [vmem:[#allocation7 + $0x40] sm:$0xff]
        %v959 = vld [vmem:[#allocation7 + $0x48] sm:$0xff]
        %v960 = vld [vmem:[#allocation7 + $0x50] sm:$0xff]
        %v961 = vld [vmem:[#allocation7 + $0x58] sm:$0xff]
        %v962 = vld [vmem:[#allocation7 + $0x60] sm:$0xff]
        %v963 = vld [vmem:[#allocation7 + $0x68] sm:$0xff]
        %v964 = vld [vmem:[#allocation7 + $0x70] sm:$0xff]
        %v965 = vld [vmem:[#allocation7 + $0x78] sm:$0xff]
        %s966 = scalar_lea.vmem [#allocation7], 128
        %v967 = vld [vmem:[%s966] sm:$0xff]
        %v968 = vld [vmem:[%s966 + $0x8] sm:$0xff]
        %v969 = vld [vmem:[%s966 + $0x10] sm:$0xff]
        %v970 = vld [vmem:[%s966 + $0x18] sm:$0xff]
        %v971 = vld [vmem:[%s966 + $0x20] sm:$0xff]
        %v972 = vld [vmem:[%s966 + $0x28] sm:$0xff]
        %v973 = vld [vmem:[%s966 + $0x30] sm:$0xff]
        %v974 = vld [vmem:[%s966 + $0x38] sm:$0xff]
        %v975 = vld [vmem:[%s966 + $0x40] sm:$0xff]
        %v976 = vld [vmem:[%s966 + $0x48] sm:$0xff]
        %v977 = vld [vmem:[%s966 + $0x50] sm:$0xff]
        %v978 = vld [vmem:[%s966 + $0x58] sm:$0xff]
        %v979 = vld [vmem:[%s966 + $0x60] sm:$0xff]
        %v980 = vld [vmem:[%s966 + $0x68] sm:$0xff]
        %v981 = vld [vmem:[%s966 + $0x70] sm:$0xff]
        %v982 = vld [vmem:[%s966 + $0x78] sm:$0xff]
        %v984 = vrot.slane %v949, 1
        %v985 = vrot.slane %v946, 1
        %v986 = vsel %vm855, %v984, %v985
        %v987 = vrot.slane %v945, 1
        %v988 = vsel %vm855, %v985, %v987
        %991 = vmatprep.subr.mxu0 0.0
        %992 = vmatpush1.msra.mxu0 %v982
        %993 = vmatprep.subr.mxu0 0.0
        %994 = vmatpush1.msra.mxu0 %v981
        %995 = vmatprep.subr.mxu0 0.0
        %996 = vmatpush1.msra.mxu0 %v980
        %997 = vmatprep.subr.mxu0 0.0
        %998 = vmatpush1.msra.mxu0 %v979
        %999 = vmatprep.subr.mxu0 0.0
        %1000 = vmatpush1.msra.mxu0 %v978
        %1001 = vmatprep.subr.mxu0 0.0
        %1002 = vmatpush1.msra.mxu0 %v977
        %1003 = vmatprep.subr.mxu0 0.0
        %1004 = vmatpush1.msra.mxu0 %v976
        %1005 = vmatprep.subr.mxu0 0.0
        %1006 = vmatpush1.msra.mxu0 %v975
        %1007 = vmatprep.subr.mxu0 0.0
        %1008 = vmatpush1.msra.mxu0 %v974
        %1009 = vmatprep.subr.mxu0 0.0
        %1010 = vmatpush1.msra.mxu0 %v973
        %1011 = vmatprep.subr.mxu0 0.0
        %1012 = vmatpush1.msra.mxu0 %v972
        %1013 = vmatprep.subr.mxu0 0.0
        %1014 = vmatpush1.msra.mxu0 %v971
        %1015 = vmatprep.subr.mxu0 0.0
        %1016 = vmatpush1.msra.mxu0 %v970
        %1017 = vmatprep.subr.mxu0 0.0
        %1018 = vmatpush1.msra.mxu0 %v969
        %1019 = vmatprep.subr.mxu0 0.0
        %1020 = vmatpush1.msra.mxu0 %v968
        %1021 = vmatprep.subr.mxu0 0.0
        %1022 = vmatpush1.msra.mxu0 %v967
        %1023 = vmatprep.subr.mxu0 0.0
        %1024 = vmatpush2.msra.mxu0 0.0
        %1025 = vmatprep.subr.mxu0 0.0
        %1026 = vmatpush2.msra.mxu0 0.0
        %1027 = vmatprep.subr.mxu0 0.0
        %1028 = vmatpush2.msra.mxu0 0.0
        %1029 = vmatprep.subr.mxu0 0.0
        %1030 = vmatpush2.msra.mxu0 0.0
        %1031 = vmatprep.subr.mxu0 0.0
        %1032 = vmatpush2.msra.mxu0 0.0
        %1033 = vmatprep.subr.mxu0 0.0
        %1034 = vmatpush2.msra.mxu0 0.0
        %1035 = vmatprep.subr.mxu0 0.0
        %1036 = vmatpush2.msra.mxu0 0.0
        %1037 = vmatprep.subr.mxu0 0.0
        %1038 = vmatpush2.msra.mxu0 0.0
        %1039 = vmatprep.subr.mxu0 0.0
        %1040 = vmatpush2.msra.mxu0 0.0
        %1041 = vmatprep.subr.mxu0 0.0
        %1042 = vmatpush2.msra.mxu0 0.0
        %1043 = vmatprep.subr.mxu0 0.0
        %1044 = vmatpush2.msra.mxu0 0.0
        %1045 = vmatprep.subr.mxu0 0.0
        %1046 = vmatpush2.msra.mxu0 0.0
        %1047 = vmatprep.subr.mxu0 0.0
        %1048 = vmatpush2.msra.mxu0 0.0
        %1049 = vmatprep.subr.mxu0 0.0
        %1050 = vmatpush2.msra.mxu0 0.0
        %1051 = vmatprep.subr.mxu0 0.0
        %1052 = vmatpush2.msra.mxu0 0.0
        %1053 = vmatprep.subr.mxu0 0.0
        %1054 = vmatpush2.msra.mxu0 0.0
        %1055 = vmatprep.mubr.f32.mxu0 0.0
        %1056 = vmatmul.mubr.f32.gmra.mxu0 %v986
        %v1057 = vpop.f32.mrf.mxu0
        %v1058 = vadd.f32 0.0, %v1057
        %v1059 = vpop.f32.mrf.mxu0
        %1060 = vmatprep.mubr.f32.mxu0 0.0
        %1061 = vmatmul.mubr.f32.gmra.mxu0 %v988
        %v1062 = vpop.f32.mrf.mxu0
        %v1063 = vadd.f32 0.0, %v1062
        %v1064 = vpop.f32.mrf.mxu0
        %1065 = vdwg.mxu0
        %1066 = vmatprep.subr.mxu0 0.0
        %1067 = vmatpush1.msra.mxu0 %v965
        %1068 = vmatprep.subr.mxu0 0.0
        %1069 = vmatpush1.msra.mxu0 %v964
        %1070 = vmatprep.subr.mxu0 0.0
        %1071 = vmatpush1.msra.mxu0 %v963
        %1072 = vmatprep.subr.mxu0 0.0
        %1073 = vmatpush1.msra.mxu0 %v962
        %1074 = vmatprep.subr.mxu0 0.0
        %1075 = vmatpush1.msra.mxu0 %v961
        %1076 = vmatprep.subr.mxu0 0.0
        %1077 = vmatpush1.msra.mxu0 %v960
        %1078 = vmatprep.subr.mxu0 0.0
        %1079 = vmatpush1.msra.mxu0 %v959
        %1080 = vmatprep.subr.mxu0 0.0
        %1081 = vmatpush1.msra.mxu0 %v958
        %1082 = vmatprep.subr.mxu0 0.0
        %1083 = vmatpush1.msra.mxu0 %v957
        %1084 = vmatprep.subr.mxu0 0.0
        %1085 = vmatpush1.msra.mxu0 %v956
        %1086 = vmatprep.subr.mxu0 0.0
        %1087 = vmatpush1.msra.mxu0 %v955
        %1088 = vmatprep.subr.mxu0 0.0
        %1089 = vmatpush1.msra.mxu0 %v954
        %1090 = vmatprep.subr.mxu0 0.0
        %1091 = vmatpush1.msra.mxu0 %v953
        %1092 = vmatprep.subr.mxu0 0.0
        %1093 = vmatpush1.msra.mxu0 %v952
        %1094 = vmatprep.subr.mxu0 0.0
        %1095 = vmatpush1.msra.mxu0 %v951
        %1096 = vmatprep.subr.mxu0 0.0
        %1097 = vmatpush1.msra.mxu0 %v950
        %1098 = vmatprep.subr.mxu0 0.0
        %1099 = vmatpush2.msra.mxu0 0.0
        %1100 = vmatprep.subr.mxu0 0.0
        %1101 = vmatpush2.msra.mxu0 0.0
        %1102 = vmatprep.subr.mxu0 0.0
        %1103 = vmatpush2.msra.mxu0 0.0
        %1104 = vmatprep.subr.mxu0 0.0
        %1105 = vmatpush2.msra.mxu0 0.0
        %1106 = vmatprep.subr.mxu0 0.0
        %1107 = vmatpush2.msra.mxu0 0.0
        %1108 = vmatprep.subr.mxu0 0.0
        %1109 = vmatpush2.msra.mxu0 0.0
        %1110 = vmatprep.subr.mxu0 0.0
        %1111 = vmatpush2.msra.mxu0 0.0
        %1112 = vmatprep.subr.mxu0 0.0
        %1113 = vmatpush2.msra.mxu0 0.0
        %1114 = vmatprep.subr.mxu0 0.0
        %1115 = vmatpush2.msra.mxu0 0.0
        %1116 = vmatprep.subr.mxu0 0.0
        %1117 = vmatpush2.msra.mxu0 0.0
        %1118 = vmatprep.subr.mxu0 0.0
        %1119 = vmatpush2.msra.mxu0 0.0
        %1120 = vmatprep.subr.mxu0 0.0
        %1121 = vmatpush2.msra.mxu0 0.0
        %1122 = vmatprep.subr.mxu0 0.0
        %1123 = vmatpush2.msra.mxu0 0.0
        %1124 = vmatprep.subr.mxu0 0.0
        %1125 = vmatpush2.msra.mxu0 0.0
        %1126 = vmatprep.subr.mxu0 0.0
        %1127 = vmatpush2.msra.mxu0 0.0
        %1128 = vmatprep.subr.mxu0 0.0
        %1129 = vmatpush2.msra.mxu0 0.0
        %1130 = vmatprep.mubr.f32.mxu0 0.0
        %1131 = vmatmul.mubr.f32.gmra.mxu0 %v949
        %v1132 = vpop.f32.mrf.mxu0
        %v1133 = vadd.f32 %v1058, %v1132
        %v1134 = vpop.f32.mrf.mxu0
        %1135 = vmatprep.mubr.f32.mxu0 0.0
        %1136 = vmatmul.mubr.f32.gmra.mxu0 %v946
        %v1137 = vpop.f32.mrf.mxu0
        %v1138 = vadd.f32 %v1063, %v1137
        %v1139 = vpop.f32.mrf.mxu0
        %1140 = vdwg.mxu0
        %s1141 = scalar_lea.vmem [#allocation7], 256
        %v1142 = vld [vmem:[%s1141] sm:$0xff]
        %v1143 = vld [vmem:[%s1141 + $0x8] sm:$0xff]
        %v1144 = vld [vmem:[%s1141 + $0x10] sm:$0xff]
        %v1145 = vld [vmem:[%s1141 + $0x18] sm:$0xff]
        %v1146 = vld [vmem:[%s1141 + $0x20] sm:$0xff]
        %v1147 = vld [vmem:[%s1141 + $0x28] sm:$0xff]
        %v1148 = vld [vmem:[%s1141 + $0x30] sm:$0xff]
        %v1149 = vld [vmem:[%s1141 + $0x38] sm:$0xff]
        %v1150 = vld [vmem:[%s1141 + $0x40] sm:$0xff]
        %v1151 = vld [vmem:[%s1141 + $0x48] sm:$0xff]
        %v1152 = vld [vmem:[%s1141 + $0x50] sm:$0xff]
        %v1153 = vld [vmem:[%s1141 + $0x58] sm:$0xff]
        %v1154 = vld [vmem:[%s1141 + $0x60] sm:$0xff]
        %v1155 = vld [vmem:[%s1141 + $0x68] sm:$0xff]
        %v1156 = vld [vmem:[%s1141 + $0x70] sm:$0xff]
        %v1157 = vld [vmem:[%s1141 + $0x78] sm:$0xff]
        %vm1158 = vcmask 1045504
        %v1159 = vrot.slane %v949, 2
        %v1160 = vrot.slane %v946, 2
        %v1161 = vsel %vm1158, %v1159, %v1160
        %v1162 = vrot.slane %v945, 2
        %v1163 = vsel %vm1158, %v1160, %v1162
        %1166 = vmatprep.subr.mxu0 0.0
        %1167 = vmatpush1.msra.mxu0 %v1157
        %1168 = vmatprep.subr.mxu0 0.0
        %1169 = vmatpush1.msra.mxu0 %v1156
        %1170 = vmatprep.subr.mxu0 0.0
        %1171 = vmatpush1.msra.mxu0 %v1155
        %1172 = vmatprep.subr.mxu0 0.0
        %1173 = vmatpush1.msra.mxu0 %v1154
        %1174 = vmatprep.subr.mxu0 0.0
        %1175 = vmatpush1.msra.mxu0 %v1153
        %1176 = vmatprep.subr.mxu0 0.0
        %1177 = vmatpush1.msra.mxu0 %v1152
        %1178 = vmatprep.subr.mxu0 0.0
        %1179 = vmatpush1.msra.mxu0 %v1151
        %1180 = vmatprep.subr.mxu0 0.0
        %1181 = vmatpush1.msra.mxu0 %v1150
        %1182 = vmatprep.subr.mxu0 0.0
        %1183 = vmatpush1.msra.mxu0 %v1149
        %1184 = vmatprep.subr.mxu0 0.0
        %1185 = vmatpush1.msra.mxu0 %v1148
        %1186 = vmatprep.subr.mxu0 0.0
        %1187 = vmatpush1.msra.mxu0 %v1147
        %1188 = vmatprep.subr.mxu0 0.0
        %1189 = vmatpush1.msra.mxu0 %v1146
        %1190 = vmatprep.subr.mxu0 0.0
        %1191 = vmatpush1.msra.mxu0 %v1145
        %1192 = vmatprep.subr.mxu0 0.0
        %1193 = vmatpush1.msra.mxu0 %v1144
        %1194 = vmatprep.subr.mxu0 0.0
        %1195 = vmatpush1.msra.mxu0 %v1143
        %1196 = vmatprep.subr.mxu0 0.0
        %1197 = vmatpush1.msra.mxu0 %v1142
        %1198 = vmatprep.subr.mxu0 0.0
        %1199 = vmatpush2.msra.mxu0 0.0
        %1200 = vmatprep.subr.mxu0 0.0
        %1201 = vmatpush2.msra.mxu0 0.0
        %1202 = vmatprep.subr.mxu0 0.0
        %1203 = vmatpush2.msra.mxu0 0.0
        %1204 = vmatprep.subr.mxu0 0.0
        %1205 = vmatpush2.msra.mxu0 0.0
        %1206 = vmatprep.subr.mxu0 0.0
        %1207 = vmatpush2.msra.mxu0 0.0
        %1208 = vmatprep.subr.mxu0 0.0
        %1209 = vmatpush2.msra.mxu0 0.0
        %1210 = vmatprep.subr.mxu0 0.0
        %1211 = vmatpush2.msra.mxu0 0.0
        %1212 = vmatprep.subr.mxu0 0.0
        %1213 = vmatpush2.msra.mxu0 0.0
        %1214 = vmatprep.subr.mxu0 0.0
        %1215 = vmatpush2.msra.mxu0 0.0
        %1216 = vmatprep.subr.mxu0 0.0
        %1217 = vmatpush2.msra.mxu0 0.0
        %1218 = vmatprep.subr.mxu0 0.0
        %1219 = vmatpush2.msra.mxu0 0.0
        %1220 = vmatprep.subr.mxu0 0.0
        %1221 = vmatpush2.msra.mxu0 0.0
        %1222 = vmatprep.subr.mxu0 0.0
        %1223 = vmatpush2.msra.mxu0 0.0
        %1224 = vmatprep.subr.mxu0 0.0
        %1225 = vmatpush2.msra.mxu0 0.0
        %1226 = vmatprep.subr.mxu0 0.0
        %1227 = vmatpush2.msra.mxu0 0.0
        %1228 = vmatprep.subr.mxu0 0.0
        %1229 = vmatpush2.msra.mxu0 0.0
        %1230 = vmatprep.mubr.f32.mxu0 0.0
        %1231 = vmatmul.mubr.f32.gmra.mxu0 %v1161
        %v1232 = vpop.f32.mrf.mxu0
        %v1233 = vadd.f32 0.0, %v1232
        %v1234 = vpop.f32.mrf.mxu0
        %1235 = vmatprep.mubr.f32.mxu0 0.0
        %1236 = vmatmul.mubr.f32.gmra.mxu0 %v1163
        %v1237 = vpop.f32.mrf.mxu0
        %v1238 = vadd.f32 0.0, %v1237
        %v1239 = vpop.f32.mrf.mxu0
        %1240 = vdwg.mxu0
        %v1241 = vadd.f32 %v1133, %v1233
        %v1242 = vadd.f32 %v1138, %v1238
        %v1243 = vld [vmem:[%s5] sm:$0x1]
        %v1245 = vlaneseq
        %v1246 = vshrl.u32 %v1245, 7
        %v1247 = vsub.s32 0, %v1246
        %v1248 = vrot.slane %v1243, %v1247
        %v1250 = vadd.f32 %v1241, %v1248
        %v1251 = vadd.f32 %v1242, %v1248
        %v1252 = vmax.f32 %v1250, 0.0
        %v1253 = vmax.f32 %v1251, 0.0
        %v1254 = vadd.f32 %v1252, %v727
        %v1255 = vadd.f32 %v1253, %v733
        %v1256 = vmax.f32 %v1254, 0.0
        %v1257 = vmax.f32 %v1255, 0.0
        %v1258 = vld [vmem:[#allocation10] sm:$0xff]
        %v1259 = vld [vmem:[#allocation10 + $0x8] sm:$0xff]
        %v1260 = vld [vmem:[#allocation10 + $0x10] sm:$0xff]
        %v1261 = vld [vmem:[#allocation10 + $0x18] sm:$0xff]
        %v1262 = vld [vmem:[#allocation10 + $0x20] sm:$0xff]
        %v1263 = vld [vmem:[#allocation10 + $0x28] sm:$0xff]
        %v1264 = vld [vmem:[#allocation10 + $0x30] sm:$0xff]
        %v1265 = vld [vmem:[#allocation10 + $0x38] sm:$0xff]
        %v1266 = vld [vmem:[#allocation10 + $0x40] sm:$0xff]
        %v1267 = vld [vmem:[#allocation10 + $0x48] sm:$0xff]
        %v1268 = vld [vmem:[#allocation10 + $0x50] sm:$0xff]
        %v1269 = vld [vmem:[#allocation10 + $0x58] sm:$0xff]
        %v1270 = vld [vmem:[#allocation10 + $0x60] sm:$0xff]
        %v1271 = vld [vmem:[#allocation10 + $0x68] sm:$0xff]
        %v1272 = vld [vmem:[#allocation10 + $0x70] sm:$0xff]
        %v1273 = vld [vmem:[#allocation10 + $0x78] sm:$0xff]
        %v1274 = vld [vmem:[#allocation10 + $0x80] sm:$0xff]
        %v1275 = vld [vmem:[#allocation10 + $0x88] sm:$0xff]
        %v1276 = vld [vmem:[#allocation10 + $0x90] sm:$0xff]
        %v1277 = vld [vmem:[#allocation10 + $0x98] sm:$0xff]
        %v1278 = vld [vmem:[#allocation10 + $0xa0] sm:$0xff]
        %v1279 = vld [vmem:[#allocation10 + $0xa8] sm:$0xff]
        %v1280 = vld [vmem:[#allocation10 + $0xb0] sm:$0xff]
        %v1281 = vld [vmem:[#allocation10 + $0xb8] sm:$0xff]
        %v1282 = vld [vmem:[#allocation10 + $0xc0] sm:$0xff]
        %v1283 = vld [vmem:[#allocation10 + $0xc8] sm:$0xff]
        %v1284 = vld [vmem:[#allocation10 + $0xd0] sm:$0xff]
        %v1285 = vld [vmem:[#allocation10 + $0xd8] sm:$0xff]
        %v1286 = vld [vmem:[#allocation10 + $0xe0] sm:$0xff]
        %v1287 = vld [vmem:[#allocation10 + $0xe8] sm:$0xff]
        %v1288 = vld [vmem:[#allocation10 + $0xf0] sm:$0xff]
        %v1289 = vld [vmem:[#allocation10 + $0xf8] sm:$0xff]
        %v1290 = vld [vmem:[%s8] sm:$0x3]
        %v1292 = vlaneseq
        %v1293 = vshrl.u32 %v1292, 7
        %v1294 = vsub.s32 0, %v1293
        %v1295 = vrot.slane %v1290, %v1294
        %v1296 = vlaneseq
        %v1297 = vshrl.u32 %v1296, 7
        %v1298 = vsub.s32 1, %v1297
        %v1299 = vrot.slane %v1290, %v1298
        %1302 = vmatprep.subr.mxu0 %v1289
        %1303 = vmatpush1.msra.mxu0 %v1288
        %1304 = vmatprep.subr.mxu0 %v1287
        %1305 = vmatpush1.msra.mxu0 %v1286
        %1306 = vmatprep.subr.mxu0 %v1285
        %1307 = vmatpush1.msra.mxu0 %v1284
        %1308 = vmatprep.subr.mxu0 %v1283
        %1309 = vmatpush1.msra.mxu0 %v1282
        %1310 = vmatprep.subr.mxu0 %v1281
        %1311 = vmatpush1.msra.mxu0 %v1280
        %1312 = vmatprep.subr.mxu0 %v1279
        %1313 = vmatpush1.msra.mxu0 %v1278
        %1314 = vmatprep.subr.mxu0 %v1277
        %1315 = vmatpush1.msra.mxu0 %v1276
        %1316 = vmatprep.subr.mxu0 %v1275
        %1317 = vmatpush1.msra.mxu0 %v1274
        %1318 = vmatprep.subr.mxu0 %v1273
        %1319 = vmatpush1.msra.mxu0 %v1272
        %1320 = vmatprep.subr.mxu0 %v1271
        %1321 = vmatpush1.msra.mxu0 %v1270
        %1322 = vmatprep.subr.mxu0 %v1269
        %1323 = vmatpush1.msra.mxu0 %v1268
        %1324 = vmatprep.subr.mxu0 %v1267
        %1325 = vmatpush1.msra.mxu0 %v1266
        %1326 = vmatprep.subr.mxu0 %v1265
        %1327 = vmatpush1.msra.mxu0 %v1264
        %1328 = vmatprep.subr.mxu0 %v1263
        %1329 = vmatpush1.msra.mxu0 %v1262
        %1330 = vmatprep.subr.mxu0 %v1261
        %1331 = vmatpush1.msra.mxu0 %v1260
        %1332 = vmatprep.subr.mxu0 %v1259
        %1333 = vmatpush1.msra.mxu0 %v1258
        %1334 = vmatprep.subr.mxu0 0.0
        %1335 = vmatpush2.msra.mxu0 0.0
        %1336 = vmatprep.subr.mxu0 0.0
        %1337 = vmatpush2.msra.mxu0 0.0
        %1338 = vmatprep.subr.mxu0 0.0
        %1339 = vmatpush2.msra.mxu0 0.0
        %1340 = vmatprep.subr.mxu0 0.0
        %1341 = vmatpush2.msra.mxu0 0.0
        %1342 = vmatprep.subr.mxu0 0.0
        %1343 = vmatpush2.msra.mxu0 0.0
        %1344 = vmatprep.subr.mxu0 0.0
        %1345 = vmatpush2.msra.mxu0 0.0
        %1346 = vmatprep.subr.mxu0 0.0
        %1347 = vmatpush2.msra.mxu0 0.0
        %1348 = vmatprep.subr.mxu0 0.0
        %1349 = vmatpush2.msra.mxu0 0.0
        %1350 = vmatprep.subr.mxu0 0.0
        %1351 = vmatpush2.msra.mxu0 0.0
        %1352 = vmatprep.subr.mxu0 0.0
        %1353 = vmatpush2.msra.mxu0 0.0
        %1354 = vmatprep.subr.mxu0 0.0
        %1355 = vmatpush2.msra.mxu0 0.0
        %1356 = vmatprep.subr.mxu0 0.0
        %1357 = vmatpush2.msra.mxu0 0.0
        %1358 = vmatprep.subr.mxu0 0.0
        %1359 = vmatpush2.msra.mxu0 0.0
        %1360 = vmatprep.subr.mxu0 0.0
        %1361 = vmatpush2.msra.mxu0 0.0
        %1362 = vmatprep.subr.mxu0 0.0
        %1363 = vmatpush2.msra.mxu0 0.0
        %1364 = vmatprep.subr.mxu0 0.0
        %1365 = vmatpush2.msra.mxu0 0.0
        %1366 = vmatprep.mubr.f32.mxu0 0.0
        %1367 = vmatmul.mubr.f32.gmra.mxu0 %v1256
        %v1368 = vpop.f32.mrf.mxu0
        %v1369 = vadd.f32 %v1295, %v1368
        %v1370 = vpop.f32.mrf.mxu0
        %1371 = vmatprep.mubr.f32.mxu0 0.0
        %1372 = vmatmul.mubr.f32.gmra.mxu0 %v1257
        %v1373 = vpop.f32.mrf.mxu0
        %v1374 = vadd.f32 %v1295, %v1373
        %v1375 = vpop.f32.mrf.mxu0
        %v1376 = vadd.f32 %v1299, %v1375
        %1377 = vdwg.mxu0
        %vm1380 = vcmask 1043456
        %v1381 = vrot.slane %v1256, 4
        %v1382 = vrot.slane %v1257, 4
        %v1383 = vsel %vm1380, %v1381, %v1382
        %v1386 = vsel %vm1380, 0.0, %v1381
        %v1387 = vld [vmem:[#allocation8] sm:$0xff]
        %v1388 = vld [vmem:[#allocation8 + $0x8] sm:$0xff]
        %v1389 = vld [vmem:[#allocation8 + $0x10] sm:$0xff]
        %v1390 = vld [vmem:[#allocation8 + $0x18] sm:$0xff]
        %v1391 = vld [vmem:[#allocation8 + $0x20] sm:$0xff]
        %v1392 = vld [vmem:[#allocation8 + $0x28] sm:$0xff]
        %v1393 = vld [vmem:[#allocation8 + $0x30] sm:$0xff]
        %v1394 = vld [vmem:[#allocation8 + $0x38] sm:$0xff]
        %v1395 = vld [vmem:[#allocation8 + $0x40] sm:$0xff]
        %v1396 = vld [vmem:[#allocation8 + $0x48] sm:$0xff]
        %v1397 = vld [vmem:[#allocation8 + $0x50] sm:$0xff]
        %v1398 = vld [vmem:[#allocation8 + $0x58] sm:$0xff]
        %v1399 = vld [vmem:[#allocation8 + $0x60] sm:$0xff]
        %v1400 = vld [vmem:[#allocation8 + $0x68] sm:$0xff]
        %v1401 = vld [vmem:[#allocation8 + $0x70] sm:$0xff]
        %v1402 = vld [vmem:[#allocation8 + $0x78] sm:$0xff]
        %1403 = vmatprep.subr.mxu0 0.0
        %1404 = vmatpush1.msra.mxu0 %v1402
        %1405 = vmatprep.subr.mxu0 0.0
        %1406 = vmatpush1.msra.mxu0 %v1401
        %1407 = vmatprep.subr.mxu0 0.0
        %1408 = vmatpush1.msra.mxu0 %v1400
        %1409 = vmatprep.subr.mxu0 0.0
        %1410 = vmatpush1.msra.mxu0 %v1399
        %1411 = vmatprep.subr.mxu0 0.0
        %1412 = vmatpush1.msra.mxu0 %v1398
        %1413 = vmatprep.subr.mxu0 0.0
        %1414 = vmatpush1.msra.mxu0 %v1397
        %1415 = vmatprep.subr.mxu0 0.0
        %1416 = vmatpush1.msra.mxu0 %v1396
        %1417 = vmatprep.subr.mxu0 0.0
        %1418 = vmatpush1.msra.mxu0 %v1395
        %1419 = vmatprep.subr.mxu0 0.0
        %1420 = vmatpush1.msra.mxu0 %v1394
        %1421 = vmatprep.subr.mxu0 0.0
        %1422 = vmatpush1.msra.mxu0 %v1393
        %1423 = vmatprep.subr.mxu0 0.0
        %1424 = vmatpush1.msra.mxu0 %v1392
        %1425 = vmatprep.subr.mxu0 0.0
        %1426 = vmatpush1.msra.mxu0 %v1391
        %1427 = vmatprep.subr.mxu0 0.0
        %1428 = vmatpush1.msra.mxu0 %v1390
        %1429 = vmatprep.subr.mxu0 0.0
        %1430 = vmatpush1.msra.mxu0 %v1389
        %1431 = vmatprep.subr.mxu0 0.0
        %1432 = vmatpush1.msra.mxu0 %v1388
        %1433 = vmatprep.subr.mxu0 0.0
        %1434 = vmatpush1.msra.mxu0 %v1387
        %1435 = vmatprep.subr.mxu0 0.0
        %1436 = vmatpush2.msra.mxu0 0.0
        %1437 = vmatprep.subr.mxu0 0.0
        %1438 = vmatpush2.msra.mxu0 0.0
        %1439 = vmatprep.subr.mxu0 0.0
        %1440 = vmatpush2.msra.mxu0 0.0
        %1441 = vmatprep.subr.mxu0 0.0
        %1442 = vmatpush2.msra.mxu0 0.0
        %1443 = vmatprep.subr.mxu0 0.0
        %1444 = vmatpush2.msra.mxu0 0.0
        %1445 = vmatprep.subr.mxu0 0.0
        %1446 = vmatpush2.msra.mxu0 0.0
        %1447 = vmatprep.subr.mxu0 0.0
        %1448 = vmatpush2.msra.mxu0 0.0
        %1449 = vmatprep.subr.mxu0 0.0
        %1450 = vmatpush2.msra.mxu0 0.0
        %1451 = vmatprep.subr.mxu0 0.0
        %1452 = vmatpush2.msra.mxu0 0.0
        %1453 = vmatprep.subr.mxu0 0.0
        %1454 = vmatpush2.msra.mxu0 0.0
        %1455 = vmatprep.subr.mxu0 0.0
        %1456 = vmatpush2.msra.mxu0 0.0
        %1457 = vmatprep.subr.mxu0 0.0
        %1458 = vmatpush2.msra.mxu0 0.0
        %1459 = vmatprep.subr.mxu0 0.0
        %1460 = vmatpush2.msra.mxu0 0.0
        %1461 = vmatprep.subr.mxu0 0.0
        %1462 = vmatpush2.msra.mxu0 0.0
        %1463 = vmatprep.subr.mxu0 0.0
        %1464 = vmatpush2.msra.mxu0 0.0
        %1465 = vmatprep.subr.mxu0 0.0
        %1466 = vmatpush2.msra.mxu0 0.0
        %1467 = vmatprep.mubr.f32.mxu0 0.0
        %1468 = vmatmul.mubr.f32.gmra.mxu0 %v1386
        %v1469 = vpop.f32.mrf.mxu0
        %v1470 = vadd.f32 0.0, %v1469
        %v1471 = vpop.f32.mrf.mxu0
        %1472 = vmatprep.mubr.f32.mxu0 0.0
        %1473 = vmatmul.mubr.f32.gmra.mxu0 %v1383
        %v1474 = vpop.f32.mrf.mxu0
        %v1475 = vadd.f32 0.0, %v1474
        %v1476 = vpop.f32.mrf.mxu0
        %1477 = vdwg.mxu0
        %v1478 = vadd.f32 %v1369, %v1470
        %v1479 = vadd.f32 %v1374, %v1475
        %s1480 = scalar_lea.vmem [#allocation8], 128
        %v1481 = vld [vmem:[%s1480] sm:$0xff]
        %v1482 = vld [vmem:[%s1480 + $0x8] sm:$0xff]
        %v1483 = vld [vmem:[%s1480 + $0x10] sm:$0xff]
        %v1484 = vld [vmem:[%s1480 + $0x18] sm:$0xff]
        %v1485 = vld [vmem:[%s1480 + $0x20] sm:$0xff]
        %v1486 = vld [vmem:[%s1480 + $0x28] sm:$0xff]
        %v1487 = vld [vmem:[%s1480 + $0x30] sm:$0xff]
        %v1488 = vld [vmem:[%s1480 + $0x38] sm:$0xff]
        %v1489 = vld [vmem:[%s1480 + $0x40] sm:$0xff]
        %v1490 = vld [vmem:[%s1480 + $0x48] sm:$0xff]
        %v1491 = vld [vmem:[%s1480 + $0x50] sm:$0xff]
        %v1492 = vld [vmem:[%s1480 + $0x58] sm:$0xff]
        %v1493 = vld [vmem:[%s1480 + $0x60] sm:$0xff]
        %v1494 = vld [vmem:[%s1480 + $0x68] sm:$0xff]
        %v1495 = vld [vmem:[%s1480 + $0x70] sm:$0xff]
        %v1496 = vld [vmem:[%s1480 + $0x78] sm:$0xff]
        %v1498 = vrot.slane %v1386, 2
        %v1499 = vrot.slane %v1383, 2
        %v1500 = vsel %vm1158, %v1498, %v1499
        %v1501 = vrot.slane %v1382, 2
        %v1502 = vsel %vm1158, %v1499, %v1501
        %1505 = vmatprep.subr.mxu0 0.0
        %1506 = vmatpush1.msra.mxu0 %v1496
        %1507 = vmatprep.subr.mxu0 0.0
        %1508 = vmatpush1.msra.mxu0 %v1495
        %1509 = vmatprep.subr.mxu0 0.0
        %1510 = vmatpush1.msra.mxu0 %v1494
        %1511 = vmatprep.subr.mxu0 0.0
        %1512 = vmatpush1.msra.mxu0 %v1493
        %1513 = vmatprep.subr.mxu0 0.0
        %1514 = vmatpush1.msra.mxu0 %v1492
        %1515 = vmatprep.subr.mxu0 0.0
        %1516 = vmatpush1.msra.mxu0 %v1491
        %1517 = vmatprep.subr.mxu0 0.0
        %1518 = vmatpush1.msra.mxu0 %v1490
        %1519 = vmatprep.subr.mxu0 0.0
        %1520 = vmatpush1.msra.mxu0 %v1489
        %1521 = vmatprep.subr.mxu0 0.0
        %1522 = vmatpush1.msra.mxu0 %v1488
        %1523 = vmatprep.subr.mxu0 0.0
        %1524 = vmatpush1.msra.mxu0 %v1487
        %1525 = vmatprep.subr.mxu0 0.0
        %1526 = vmatpush1.msra.mxu0 %v1486
        %1527 = vmatprep.subr.mxu0 0.0
        %1528 = vmatpush1.msra.mxu0 %v1485
        %1529 = vmatprep.subr.mxu0 0.0
        %1530 = vmatpush1.msra.mxu0 %v1484
        %1531 = vmatprep.subr.mxu0 0.0
        %1532 = vmatpush1.msra.mxu0 %v1483
        %1533 = vmatprep.subr.mxu0 0.0
        %1534 = vmatpush1.msra.mxu0 %v1482
        %1535 = vmatprep.subr.mxu0 0.0
        %1536 = vmatpush1.msra.mxu0 %v1481
        %1537 = vmatprep.subr.mxu0 0.0
        %1538 = vmatpush2.msra.mxu0 0.0
        %1539 = vmatprep.subr.mxu0 0.0
        %1540 = vmatpush2.msra.mxu0 0.0
        %1541 = vmatprep.subr.mxu0 0.0
        %1542 = vmatpush2.msra.mxu0 0.0
        %1543 = vmatprep.subr.mxu0 0.0
        %1544 = vmatpush2.msra.mxu0 0.0
        %1545 = vmatprep.subr.mxu0 0.0
        %1546 = vmatpush2.msra.mxu0 0.0
        %1547 = vmatprep.subr.mxu0 0.0
        %1548 = vmatpush2.msra.mxu0 0.0
        %1549 = vmatprep.subr.mxu0 0.0
        %1550 = vmatpush2.msra.mxu0 0.0
        %1551 = vmatprep.subr.mxu0 0.0
        %1552 = vmatpush2.msra.mxu0 0.0
        %1553 = vmatprep.subr.mxu0 0.0
        %1554 = vmatpush2.msra.mxu0 0.0
        %1555 = vmatprep.subr.mxu0 0.0
        %1556 = vmatpush2.msra.mxu0 0.0
        %1557 = vmatprep.subr.mxu0 0.0
        %1558 = vmatpush2.msra.mxu0 0.0
        %1559 = vmatprep.subr.mxu0 0.0
        %1560 = vmatpush2.msra.mxu0 0.0
        %1561 = vmatprep.subr.mxu0 0.0
        %1562 = vmatpush2.msra.mxu0 0.0
        %1563 = vmatprep.subr.mxu0 0.0
        %1564 = vmatpush2.msra.mxu0 0.0
        %1565 = vmatprep.subr.mxu0 0.0
        %1566 = vmatpush2.msra.mxu0 0.0
        %1567 = vmatprep.subr.mxu0 0.0
        %1568 = vmatpush2.msra.mxu0 0.0
        %1569 = vmatprep.mubr.f32.mxu0 0.0
        %1570 = vmatmul.mubr.f32.gmra.mxu0 %v1500
        %v1571 = vpop.f32.mrf.mxu0
        %v1572 = vadd.f32 0.0, %v1571
        %v1573 = vpop.f32.mrf.mxu0
        %1574 = vmatprep.mubr.f32.mxu0 0.0
        %1575 = vmatmul.mubr.f32.gmra.mxu0 %v1502
        %v1576 = vpop.f32.mrf.mxu0
        %v1577 = vadd.f32 0.0, %v1576
        %v1578 = vpop.f32.mrf.mxu0
        %1579 = vdwg.mxu0
        %v1580 = vadd.f32 %v1478, %v1572
        %v1581 = vadd.f32 %v1479, %v1577
        %v1582 = vmax.f32 %v1580, 0.0
        %v1583 = vmax.f32 %v1581, 0.0
        %v1586 = vrot.slane %v1582, 4
        %v1587 = vrot.slane %v1583, 4
        %v1588 = vsel %vm1380, %v1586, %v1587
        %v1591 = vsel %vm1380, 0.0, %v1586
        %v1592 = vld [vmem:[#allocation11] sm:$0xff]
        %v1593 = vld [vmem:[#allocation11 + $0x8] sm:$0xff]
        %v1594 = vld [vmem:[#allocation11 + $0x10] sm:$0xff]
        %v1595 = vld [vmem:[#allocation11 + $0x18] sm:$0xff]
        %v1596 = vld [vmem:[#allocation11 + $0x20] sm:$0xff]
        %v1597 = vld [vmem:[#allocation11 + $0x28] sm:$0xff]
        %v1598 = vld [vmem:[#allocation11 + $0x30] sm:$0xff]
        %v1599 = vld [vmem:[#allocation11 + $0x38] sm:$0xff]
        %v1600 = vld [vmem:[#allocation11 + $0x40] sm:$0xff]
        %v1601 = vld [vmem:[#allocation11 + $0x48] sm:$0xff]
        %v1602 = vld [vmem:[#allocation11 + $0x50] sm:$0xff]
        %v1603 = vld [vmem:[#allocation11 + $0x58] sm:$0xff]
        %v1604 = vld [vmem:[#allocation11 + $0x60] sm:$0xff]
        %v1605 = vld [vmem:[#allocation11 + $0x68] sm:$0xff]
        %v1606 = vld [vmem:[#allocation11 + $0x70] sm:$0xff]
        %v1607 = vld [vmem:[#allocation11 + $0x78] sm:$0xff]
        %s1608 = scalar_lea.vmem [#allocation11], 128
        %v1609 = vld [vmem:[%s1608] sm:$0xff]
        %v1610 = vld [vmem:[%s1608 + $0x8] sm:$0xff]
        %v1611 = vld [vmem:[%s1608 + $0x10] sm:$0xff]
        %v1612 = vld [vmem:[%s1608 + $0x18] sm:$0xff]
        %v1613 = vld [vmem:[%s1608 + $0x20] sm:$0xff]
        %v1614 = vld [vmem:[%s1608 + $0x28] sm:$0xff]
        %v1615 = vld [vmem:[%s1608 + $0x30] sm:$0xff]
        %v1616 = vld [vmem:[%s1608 + $0x38] sm:$0xff]
        %v1617 = vld [vmem:[%s1608 + $0x40] sm:$0xff]
        %v1618 = vld [vmem:[%s1608 + $0x48] sm:$0xff]
        %v1619 = vld [vmem:[%s1608 + $0x50] sm:$0xff]
        %v1620 = vld [vmem:[%s1608 + $0x58] sm:$0xff]
        %v1621 = vld [vmem:[%s1608 + $0x60] sm:$0xff]
        %v1622 = vld [vmem:[%s1608 + $0x68] sm:$0xff]
        %v1623 = vld [vmem:[%s1608 + $0x70] sm:$0xff]
        %v1624 = vld [vmem:[%s1608 + $0x78] sm:$0xff]
        %v1626 = vrot.slane %v1591, 2
        %v1627 = vrot.slane %v1588, 2
        %v1628 = vsel %vm1158, %v1626, %v1627
        %v1629 = vrot.slane %v1587, 2
        %v1630 = vsel %vm1158, %v1627, %v1629
        %1633 = vmatprep.subr.mxu0 0.0
        %1634 = vmatpush1.msra.mxu0 %v1624
        %1635 = vmatprep.subr.mxu0 0.0
        %1636 = vmatpush1.msra.mxu0 %v1623
        %1637 = vmatprep.subr.mxu0 0.0
        %1638 = vmatpush1.msra.mxu0 %v1622
        %1639 = vmatprep.subr.mxu0 0.0
        %1640 = vmatpush1.msra.mxu0 %v1621
        %1641 = vmatprep.subr.mxu0 0.0
        %1642 = vmatpush1.msra.mxu0 %v1620
        %1643 = vmatprep.subr.mxu0 0.0
        %1644 = vmatpush1.msra.mxu0 %v1619
        %1645 = vmatprep.subr.mxu0 0.0
        %1646 = vmatpush1.msra.mxu0 %v1618
        %1647 = vmatprep.subr.mxu0 0.0
        %1648 = vmatpush1.msra.mxu0 %v1617
        %1649 = vmatprep.subr.mxu0 0.0
        %1650 = vmatpush1.msra.mxu0 %v1616
        %1651 = vmatprep.subr.mxu0 0.0
        %1652 = vmatpush1.msra.mxu0 %v1615
        %1653 = vmatprep.subr.mxu0 0.0
        %1654 = vmatpush1.msra.mxu0 %v1614
        %1655 = vmatprep.subr.mxu0 0.0
        %1656 = vmatpush1.msra.mxu0 %v1613
        %1657 = vmatprep.subr.mxu0 0.0
        %1658 = vmatpush1.msra.mxu0 %v1612
        %1659 = vmatprep.subr.mxu0 0.0
        %1660 = vmatpush1.msra.mxu0 %v1611
        %1661 = vmatprep.subr.mxu0 0.0
        %1662 = vmatpush1.msra.mxu0 %v1610
        %1663 = vmatprep.subr.mxu0 0.0
        %1664 = vmatpush1.msra.mxu0 %v1609
        %1665 = vmatprep.subr.mxu0 0.0
        %1666 = vmatpush2.msra.mxu0 0.0
        %1667 = vmatprep.subr.mxu0 0.0
        %1668 = vmatpush2.msra.mxu0 0.0
        %1669 = vmatprep.subr.mxu0 0.0
        %1670 = vmatpush2.msra.mxu0 0.0
        %1671 = vmatprep.subr.mxu0 0.0
        %1672 = vmatpush2.msra.mxu0 0.0
        %1673 = vmatprep.subr.mxu0 0.0
        %1674 = vmatpush2.msra.mxu0 0.0
        %1675 = vmatprep.subr.mxu0 0.0
        %1676 = vmatpush2.msra.mxu0 0.0
        %1677 = vmatprep.subr.mxu0 0.0
        %1678 = vmatpush2.msra.mxu0 0.0
        %1679 = vmatprep.subr.mxu0 0.0
        %1680 = vmatpush2.msra.mxu0 0.0
        %1681 = vmatprep.subr.mxu0 0.0
        %1682 = vmatpush2.msra.mxu0 0.0
        %1683 = vmatprep.subr.mxu0 0.0
        %1684 = vmatpush2.msra.mxu0 0.0
        %1685 = vmatprep.subr.mxu0 0.0
        %1686 = vmatpush2.msra.mxu0 0.0
        %1687 = vmatprep.subr.mxu0 0.0
        %1688 = vmatpush2.msra.mxu0 0.0
        %1689 = vmatprep.subr.mxu0 0.0
        %1690 = vmatpush2.msra.mxu0 0.0
        %1691 = vmatprep.subr.mxu0 0.0
        %1692 = vmatpush2.msra.mxu0 0.0
        %1693 = vmatprep.subr.mxu0 0.0
        %1694 = vmatpush2.msra.mxu0 0.0
        %1695 = vmatprep.subr.mxu0 0.0
        %1696 = vmatpush2.msra.mxu0 0.0
        %1697 = vmatprep.mubr.f32.mxu0 0.0
        %1698 = vmatmul.mubr.f32.gmra.mxu0 %v1628
        %v1699 = vpop.f32.mrf.mxu0
        %v1700 = vpop.f32.mrf.mxu0
        %1701 = vmatprep.mubr.f32.mxu0 0.0
        %1702 = vmatmul.mubr.f32.gmra.mxu0 %v1630
        %v1703 = vpop.f32.mrf.mxu0
        %v1704 = vadd.f32 0.0, %v1703
        %v1705 = vpop.f32.mrf.mxu0
        %1706 = vdwg.mxu0
        %1707 = vmatprep.subr.mxu0 0.0
        %1708 = vmatpush1.msra.mxu0 %v1607
        %1709 = vmatprep.subr.mxu0 0.0
        %1710 = vmatpush1.msra.mxu0 %v1606
        %1711 = vmatprep.subr.mxu0 0.0
        %1712 = vmatpush1.msra.mxu0 %v1605
        %1713 = vmatprep.subr.mxu0 0.0
        %1714 = vmatpush1.msra.mxu0 %v1604
        %1715 = vmatprep.subr.mxu0 0.0
        %1716 = vmatpush1.msra.mxu0 %v1603
        %1717 = vmatprep.subr.mxu0 0.0
        %1718 = vmatpush1.msra.mxu0 %v1602
        %1719 = vmatprep.subr.mxu0 0.0
        %1720 = vmatpush1.msra.mxu0 %v1601
        %1721 = vmatprep.subr.mxu0 0.0
        %1722 = vmatpush1.msra.mxu0 %v1600
        %1723 = vmatprep.subr.mxu0 0.0
        %1724 = vmatpush1.msra.mxu0 %v1599
        %1725 = vmatprep.subr.mxu0 0.0
        %1726 = vmatpush1.msra.mxu0 %v1598
        %1727 = vmatprep.subr.mxu0 0.0
        %1728 = vmatpush1.msra.mxu0 %v1597
        %1729 = vmatprep.subr.mxu0 0.0
        %1730 = vmatpush1.msra.mxu0 %v1596
        %1731 = vmatprep.subr.mxu0 0.0
        %1732 = vmatpush1.msra.mxu0 %v1595
        %1733 = vmatprep.subr.mxu0 0.0
        %1734 = vmatpush1.msra.mxu0 %v1594
        %1735 = vmatprep.subr.mxu0 0.0
        %1736 = vmatpush1.msra.mxu0 %v1593
        %1737 = vmatprep.subr.mxu0 0.0
        %1738 = vmatpush1.msra.mxu0 %v1592
        %1739 = vmatprep.subr.mxu0 0.0
        %1740 = vmatpush2.msra.mxu0 0.0
        %1741 = vmatprep.subr.mxu0 0.0
        %1742 = vmatpush2.msra.mxu0 0.0
        %1743 = vmatprep.subr.mxu0 0.0
        %1744 = vmatpush2.msra.mxu0 0.0
        %1745 = vmatprep.subr.mxu0 0.0
        %1746 = vmatpush2.msra.mxu0 0.0
        %1747 = vmatprep.subr.mxu0 0.0
        %1748 = vmatpush2.msra.mxu0 0.0
        %1749 = vmatprep.subr.mxu0 0.0
        %1750 = vmatpush2.msra.mxu0 0.0
        %1751 = vmatprep.subr.mxu0 0.0
        %1752 = vmatpush2.msra.mxu0 0.0
        %1753 = vmatprep.subr.mxu0 0.0
        %1754 = vmatpush2.msra.mxu0 0.0
        %1755 = vmatprep.subr.mxu0 0.0
        %1756 = vmatpush2.msra.mxu0 0.0
        %1757 = vmatprep.subr.mxu0 0.0
        %1758 = vmatpush2.msra.mxu0 0.0
        %1759 = vmatprep.subr.mxu0 0.0
        %1760 = vmatpush2.msra.mxu0 0.0
        %1761 = vmatprep.subr.mxu0 0.0
        %1762 = vmatpush2.msra.mxu0 0.0
        %1763 = vmatprep.subr.mxu0 0.0
        %1764 = vmatpush2.msra.mxu0 0.0
        %1765 = vmatprep.subr.mxu0 0.0
        %1766 = vmatpush2.msra.mxu0 0.0
        %1767 = vmatprep.subr.mxu0 0.0
        %1768 = vmatpush2.msra.mxu0 0.0
        %1769 = vmatprep.subr.mxu0 0.0
        %1770 = vmatpush2.msra.mxu0 0.0
        %1771 = vmatprep.mubr.f32.mxu0 0.0
        %1772 = vmatmul.mubr.f32.gmra.mxu0 %v1591
        %v1773 = vpop.f32.mrf.mxu0
        %v1774 = vpop.f32.mrf.mxu0
        %1775 = vmatprep.mubr.f32.mxu0 0.0
        %1776 = vmatmul.mubr.f32.gmra.mxu0 %v1588
        %v1777 = vpop.f32.mrf.mxu0
        %v1778 = vadd.f32 %v1704, %v1777
        %v1779 = vpop.f32.mrf.mxu0
        %1780 = vdwg.mxu0
        %s1781 = scalar_lea.vmem [#allocation11], 256
        %v1782 = vld [vmem:[%s1781] sm:$0xff]
        %v1783 = vld [vmem:[%s1781 + $0x8] sm:$0xff]
        %v1784 = vld [vmem:[%s1781 + $0x10] sm:$0xff]
        %v1785 = vld [vmem:[%s1781 + $0x18] sm:$0xff]
        %v1786 = vld [vmem:[%s1781 + $0x20] sm:$0xff]
        %v1787 = vld [vmem:[%s1781 + $0x28] sm:$0xff]
        %v1788 = vld [vmem:[%s1781 + $0x30] sm:$0xff]
        %v1789 = vld [vmem:[%s1781 + $0x38] sm:$0xff]
        %v1790 = vld [vmem:[%s1781 + $0x40] sm:$0xff]
        %v1791 = vld [vmem:[%s1781 + $0x48] sm:$0xff]
        %v1792 = vld [vmem:[%s1781 + $0x50] sm:$0xff]
        %v1793 = vld [vmem:[%s1781 + $0x58] sm:$0xff]
        %v1794 = vld [vmem:[%s1781 + $0x60] sm:$0xff]
        %v1795 = vld [vmem:[%s1781 + $0x68] sm:$0xff]
        %v1796 = vld [vmem:[%s1781 + $0x70] sm:$0xff]
        %v1797 = vld [vmem:[%s1781 + $0x78] sm:$0xff]
        %v1798 = vrot.slane %v1591, 4
        %v1799 = vrot.slane %v1588, 4
        %v1800 = vsel %vm1380, %v1798, %v1799
        %v1801 = vrot.slane %v1587, 4
        %v1802 = vsel %vm1380, %v1799, %v1801
        %1805 = vmatprep.subr.mxu0 0.0
        %1806 = vmatpush1.msra.mxu0 %v1797
        %1807 = vmatprep.subr.mxu0 0.0
        %1808 = vmatpush1.msra.mxu0 %v1796
        %1809 = vmatprep.subr.mxu0 0.0
        %1810 = vmatpush1.msra.mxu0 %v1795
        %1811 = vmatprep.subr.mxu0 0.0
        %1812 = vmatpush1.msra.mxu0 %v1794
        %1813 = vmatprep.subr.mxu0 0.0
        %1814 = vmatpush1.msra.mxu0 %v1793
        %1815 = vmatprep.subr.mxu0 0.0
        %1816 = vmatpush1.msra.mxu0 %v1792
        %1817 = vmatprep.subr.mxu0 0.0
        %1818 = vmatpush1.msra.mxu0 %v1791
        %1819 = vmatprep.subr.mxu0 0.0
        %1820 = vmatpush1.msra.mxu0 %v1790
        %1821 = vmatprep.subr.mxu0 0.0
        %1822 = vmatpush1.msra.mxu0 %v1789
        %1823 = vmatprep.subr.mxu0 0.0
        %1824 = vmatpush1.msra.mxu0 %v1788
        %1825 = vmatprep.subr.mxu0 0.0
        %1826 = vmatpush1.msra.mxu0 %v1787
        %1827 = vmatprep.subr.mxu0 0.0
        %1828 = vmatpush1.msra.mxu0 %v1786
        %1829 = vmatprep.subr.mxu0 0.0
        %1830 = vmatpush1.msra.mxu0 %v1785
        %1831 = vmatprep.subr.mxu0 0.0
        %1832 = vmatpush1.msra.mxu0 %v1784
        %1833 = vmatprep.subr.mxu0 0.0
        %1834 = vmatpush1.msra.mxu0 %v1783
        %1835 = vmatprep.subr.mxu0 0.0
        %1836 = vmatpush1.msra.mxu0 %v1782
        %1837 = vmatprep.subr.mxu0 0.0
        %1838 = vmatpush2.msra.mxu0 0.0
        %1839 = vmatprep.subr.mxu0 0.0
        %1840 = vmatpush2.msra.mxu0 0.0
        %1841 = vmatprep.subr.mxu0 0.0
        %1842 = vmatpush2.msra.mxu0 0.0
        %1843 = vmatprep.subr.mxu0 0.0
        %1844 = vmatpush2.msra.mxu0 0.0
        %1845 = vmatprep.subr.mxu0 0.0
        %1846 = vmatpush2.msra.mxu0 0.0
        %1847 = vmatprep.subr.mxu0 0.0
        %1848 = vmatpush2.msra.mxu0 0.0
        %1849 = vmatprep.subr.mxu0 0.0
        %1850 = vmatpush2.msra.mxu0 0.0
        %1851 = vmatprep.subr.mxu0 0.0
        %1852 = vmatpush2.msra.mxu0 0.0
        %1853 = vmatprep.subr.mxu0 0.0
        %1854 = vmatpush2.msra.mxu0 0.0
        %1855 = vmatprep.subr.mxu0 0.0
        %1856 = vmatpush2.msra.mxu0 0.0
        %1857 = vmatprep.subr.mxu0 0.0
        %1858 = vmatpush2.msra.mxu0 0.0
        %1859 = vmatprep.subr.mxu0 0.0
        %1860 = vmatpush2.msra.mxu0 0.0
        %1861 = vmatprep.subr.mxu0 0.0
        %1862 = vmatpush2.msra.mxu0 0.0
        %1863 = vmatprep.subr.mxu0 0.0
        %1864 = vmatpush2.msra.mxu0 0.0
        %1865 = vmatprep.subr.mxu0 0.0
        %1866 = vmatpush2.msra.mxu0 0.0
        %1867 = vmatprep.subr.mxu0 0.0
        %1868 = vmatpush2.msra.mxu0 0.0
        %1869 = vmatprep.mubr.f32.mxu0 0.0
        %1870 = vmatmul.mubr.f32.gmra.mxu0 %v1800
        %v1871 = vpop.f32.mrf.mxu0
        %v1872 = vpop.f32.mrf.mxu0
        %1873 = vmatprep.mubr.f32.mxu0 0.0
        %1874 = vmatmul.mubr.f32.gmra.mxu0 %v1802
        %v1875 = vpop.f32.mrf.mxu0
        %v1876 = vadd.f32 0.0, %v1875
        %v1877 = vpop.f32.mrf.mxu0
        %1878 = vdwg.mxu0
        %v1879 = vadd.f32 %v1778, %v1876
        %v1880 = vld [vmem:[%s10] sm:$0x1]
        %v1882 = vlaneseq
        %v1883 = vshrl.u32 %v1882, 7
        %v1884 = vsub.s32 0, %v1883
        %v1885 = vrot.slane %v1880, %v1884
        %v1887 = vadd.f32 %v1879, %v1885
        %v1888 = vmax.f32 %v1887, 0.0
        %v1889 = vadd.f32 %v1888, %v1376
        %v1890 = vmax.f32 %v1889, 0.0
        %v1891 = vld [vmem:[#allocation13] sm:$0xff]
        %v1892 = vld [vmem:[#allocation13 + $0x8] sm:$0xff]
        %v1893 = vld [vmem:[#allocation13 + $0x10] sm:$0xff]
        %v1894 = vld [vmem:[#allocation13 + $0x18] sm:$0xff]
        %v1895 = vld [vmem:[#allocation13 + $0x20] sm:$0xff]
        %v1896 = vld [vmem:[#allocation13 + $0x28] sm:$0xff]
        %v1897 = vld [vmem:[#allocation13 + $0x30] sm:$0xff]
        %v1898 = vld [vmem:[#allocation13 + $0x38] sm:$0xff]
        %v1899 = vld [vmem:[#allocation13 + $0x40] sm:$0xff]
        %v1900 = vld [vmem:[#allocation13 + $0x48] sm:$0xff]
        %v1901 = vld [vmem:[#allocation13 + $0x50] sm:$0xff]
        %v1902 = vld [vmem:[#allocation13 + $0x58] sm:$0xff]
        %v1903 = vld [vmem:[#allocation13 + $0x60] sm:$0xff]
        %v1904 = vld [vmem:[#allocation13 + $0x68] sm:$0xff]
        %v1905 = vld [vmem:[#allocation13 + $0x70] sm:$0xff]
        %v1906 = vld [vmem:[#allocation13 + $0x78] sm:$0xff]
        %v1907 = vld [vmem:[%s12] sm:$0x1]
        %v1909 = vrot.slane %v1890, 7
        %1911 = vmatprep.subr.mxu0 0.0
        %1912 = vmatpush1.msra.mxu0 %v1906
        %1913 = vmatprep.subr.mxu0 0.0
        %1914 = vmatpush1.msra.mxu0 %v1905
        %1915 = vmatprep.subr.mxu0 0.0
        %1916 = vmatpush1.msra.mxu0 %v1904
        %1917 = vmatprep.subr.mxu0 0.0
        %1918 = vmatpush1.msra.mxu0 %v1903
        %1919 = vmatprep.subr.mxu0 0.0
        %1920 = vmatpush1.msra.mxu0 %v1902
        %1921 = vmatprep.subr.mxu0 0.0
        %1922 = vmatpush1.msra.mxu0 %v1901
        %1923 = vmatprep.subr.mxu0 0.0
        %1924 = vmatpush1.msra.mxu0 %v1900
        %1925 = vmatprep.subr.mxu0 0.0
        %1926 = vmatpush1.msra.mxu0 %v1899
        %1927 = vmatprep.subr.mxu0 0.0
        %1928 = vmatpush1.msra.mxu0 %v1898
        %1929 = vmatprep.subr.mxu0 0.0
        %1930 = vmatpush1.msra.mxu0 %v1897
        %1931 = vmatprep.subr.mxu0 0.0
        %1932 = vmatpush1.msra.mxu0 %v1896
        %1933 = vmatprep.subr.mxu0 0.0
        %1934 = vmatpush1.msra.mxu0 %v1895
        %1935 = vmatprep.subr.mxu0 0.0
        %1936 = vmatpush1.msra.mxu0 %v1894
        %1937 = vmatprep.subr.mxu0 0.0
        %1938 = vmatpush1.msra.mxu0 %v1893
        %1939 = vmatprep.subr.mxu0 0.0
        %1940 = vmatpush1.msra.mxu0 %v1892
        %1941 = vmatprep.subr.mxu0 0.0
        %1942 = vmatpush1.msra.mxu0 %v1891
        %1943 = vmatprep.subr.mxu0 0.0
        %1944 = vmatpush2.msra.mxu0 0.0
        %1945 = vmatprep.subr.mxu0 0.0
        %1946 = vmatpush2.msra.mxu0 0.0
        %1947 = vmatprep.subr.mxu0 0.0
        %1948 = vmatpush2.msra.mxu0 0.0
        %1949 = vmatprep.subr.mxu0 0.0
        %1950 = vmatpush2.msra.mxu0 0.0
        %1951 = vmatprep.subr.mxu0 0.0
        %1952 = vmatpush2.msra.mxu0 0.0
        %1953 = vmatprep.subr.mxu0 0.0
        %1954 = vmatpush2.msra.mxu0 0.0
        %1955 = vmatprep.subr.mxu0 0.0
        %1956 = vmatpush2.msra.mxu0 0.0
        %1957 = vmatprep.subr.mxu0 0.0
        %1958 = vmatpush2.msra.mxu0 0.0
        %1959 = vmatprep.subr.mxu0 0.0
        %1960 = vmatpush2.msra.mxu0 0.0
        %1961 = vmatprep.subr.mxu0 0.0
        %1962 = vmatpush2.msra.mxu0 0.0
        %1963 = vmatprep.subr.mxu0 0.0
        %1964 = vmatpush2.msra.mxu0 0.0
        %1965 = vmatprep.subr.mxu0 0.0
        %1966 = vmatpush2.msra.mxu0 0.0
        %1967 = vmatprep.subr.mxu0 0.0
        %1968 = vmatpush2.msra.mxu0 0.0
        %1969 = vmatprep.subr.mxu0 0.0
        %1970 = vmatpush2.msra.mxu0 0.0
        %1971 = vmatprep.subr.mxu0 0.0
        %1972 = vmatpush2.msra.mxu0 0.0
        %1973 = vmatprep.subr.mxu0 0.0
        %1974 = vmatpush2.msra.mxu0 0.0
        %1975 = vmatprep.mubr.f32.mxu0 0.0
        %1976 = vmatmul.mubr.f32.gmra.mxu0 %v1909
        %v1977 = vpop.f32.mrf.mxu0
        %v1978 = vadd.f32 %v1907, %v1977
        %v1979 = vpop.f32.mrf.mxu0
        %1980 = vdwg.mxu0
        %v1981 = vmax.f32 %v1978, 0.0
        %v1982 = vld [vmem:[#allocation14] sm:$0xff]
        %v1983 = vld [vmem:[#allocation14 + $0x8] sm:$0xff]
        %v1984 = vld [vmem:[#allocation14 + $0x10] sm:$0xff]
        %v1985 = vld [vmem:[#allocation14 + $0x18] sm:$0xff]
        %v1986 = vld [vmem:[#allocation14 + $0x20] sm:$0xff]
        %v1987 = vld [vmem:[#allocation14 + $0x28] sm:$0xff]
        %v1988 = vld [vmem:[#allocation14 + $0x30] sm:$0xff]
        %v1989 = vld [vmem:[#allocation14 + $0x38] sm:$0xff]
        %v1990 = vld [vmem:[#allocation14 + $0x40] sm:$0xff]
        %v1991 = vld [vmem:[#allocation14 + $0x48] sm:$0xff]
        %v1992 = vld [vmem:[#allocation14 + $0x50] sm:$0xff]
        %v1993 = vld [vmem:[#allocation14 + $0x58] sm:$0xff]
        %v1994 = vld [vmem:[#allocation14 + $0x60] sm:$0xff]
        %v1995 = vld [vmem:[#allocation14 + $0x68] sm:$0xff]
        %v1996 = vld [vmem:[#allocation14 + $0x70] sm:$0xff]
        %v1997 = vld [vmem:[#allocation14 + $0x78] sm:$0xff]
        %v1998 = vld [vmem:[%s14] sm:$0x1]
        %1999 = vmatprep.subr.mxu0 0.0
        %2000 = vmatpush1.msra.mxu0 %v1997
        %2001 = vmatprep.subr.mxu0 0.0
        %2002 = vmatpush1.msra.mxu0 %v1996
        %2003 = vmatprep.subr.mxu0 0.0
        %2004 = vmatpush1.msra.mxu0 %v1995
        %2005 = vmatprep.subr.mxu0 0.0
        %2006 = vmatpush1.msra.mxu0 %v1994
        %2007 = vmatprep.subr.mxu0 0.0
        %2008 = vmatpush1.msra.mxu0 %v1993
        %2009 = vmatprep.subr.mxu0 0.0
        %2010 = vmatpush1.msra.mxu0 %v1992
        %2011 = vmatprep.subr.mxu0 0.0
        %2012 = vmatpush1.msra.mxu0 %v1991
        %2013 = vmatprep.subr.mxu0 0.0
        %2014 = vmatpush1.msra.mxu0 %v1990
        %2015 = vmatprep.subr.mxu0 0.0
        %2016 = vmatpush1.msra.mxu0 %v1989
        %2017 = vmatprep.subr.mxu0 0.0
        %2018 = vmatpush1.msra.mxu0 %v1988
        %2019 = vmatprep.subr.mxu0 0.0
        %2020 = vmatpush1.msra.mxu0 %v1987
        %2021 = vmatprep.subr.mxu0 0.0
        %2022 = vmatpush1.msra.mxu0 %v1986
        %2023 = vmatprep.subr.mxu0 0.0
        %2024 = vmatpush1.msra.mxu0 %v1985
        %2025 = vmatprep.subr.mxu0 0.0
        %2026 = vmatpush1.msra.mxu0 %v1984
        %2027 = vmatprep.subr.mxu0 0.0
        %2028 = vmatpush1.msra.mxu0 %v1983
        %2029 = vmatprep.subr.mxu0 0.0
        %2030 = vmatpush1.msra.mxu0 %v1982
        %2031 = vmatprep.subr.mxu0 0.0
        %2032 = vmatpush2.msra.mxu0 0.0
        %2033 = vmatprep.subr.mxu0 0.0
        %2034 = vmatpush2.msra.mxu0 0.0
        %2035 = vmatprep.subr.mxu0 0.0
        %2036 = vmatpush2.msra.mxu0 0.0
        %2037 = vmatprep.subr.mxu0 0.0
        %2038 = vmatpush2.msra.mxu0 0.0
        %2039 = vmatprep.subr.mxu0 0.0
        %2040 = vmatpush2.msra.mxu0 0.0
        %2041 = vmatprep.subr.mxu0 0.0
        %2042 = vmatpush2.msra.mxu0 0.0
        %2043 = vmatprep.subr.mxu0 0.0
        %2044 = vmatpush2.msra.mxu0 0.0
        %2045 = vmatprep.subr.mxu0 0.0
        %2046 = vmatpush2.msra.mxu0 0.0
        %2047 = vmatprep.subr.mxu0 0.0
        %2048 = vmatpush2.msra.mxu0 0.0
        %2049 = vmatprep.subr.mxu0 0.0
        %2050 = vmatpush2.msra.mxu0 0.0
        %2051 = vmatprep.subr.mxu0 0.0
        %2052 = vmatpush2.msra.mxu0 0.0
        %2053 = vmatprep.subr.mxu0 0.0
        %2054 = vmatpush2.msra.mxu0 0.0
        %2055 = vmatprep.subr.mxu0 0.0
        %2056 = vmatpush2.msra.mxu0 0.0
        %2057 = vmatprep.subr.mxu0 0.0
        %2058 = vmatpush2.msra.mxu0 0.0
        %2059 = vmatprep.subr.mxu0 0.0
        %2060 = vmatpush2.msra.mxu0 0.0
        %2061 = vmatprep.subr.mxu0 0.0
        %2062 = vmatpush2.msra.mxu0 0.0
        %2063 = vmatprep.mubr.f32.mxu0 0.0
        %2064 = vmatmul.mubr.f32.gmra.mxu0 %v1981
        %v2065 = vpop.f32.mrf.mxu0
        %v2066 = vadd.f32 %v1998, %v2065
        %v2067 = vpop.f32.mrf.mxu0
        %2068 = vdwg.mxu0
        %v2069 = vsub.f32 0.0, %v2066
        %v2070 = vmul.f32 %v2069, 1.442695
        %v2071 = vpow.pop %v2070
        %v2072 = vadd.f32 %v2071, 1.0
        %v2073 = vrcp.pop %v2072
        %2074 = vst [vmem:[%s603] sm:$0x1] %v2073
        %s2075 = sand.u32 %s362, 1
        %s2076 = scalar_lea.sflag [#allocation4], %s2075
        %s2077 = sand.u32 %s362, 1
        %s2078 = scalar_lea.vmem [#allocation16], %s2077
        // Predicated region
        $region113: #{tpu_custom_call.1} parent=79 // pred_check
          %p2079 = pneg %p372
        $region114: #{tpu_custom_call.1} parent=79 // pred_check_branch
          %2081 = sbr.rel (%p2079) target = $region116
        $region115: #{tpu_custom_call.1} parent=79 // pred_region
          %s2083 = ssub.s32 16, 16
          %2084 = vsyncadd %s2076, %s2083
          %s2085 = smul.addr %s34, 16
          %s2086 = scalar_lea.hbm %s15, %s2085
          %s2088 = sshll.u32 %s2078, 4
          %s2089 = int_to_ptr.vmem [resolvable:$true] %s2088
          %2091 = dma.vmem_to_hbm [thread:$0]  %s2089, 16, %s2086, %s2076
        $region116: #{tpu_custom_call.1} parent=79 // pred_fallthru
          _
      $region80: #{tpu_custom_call.1} parent=5 // pred_fallthru
        _
      %p2092 = scmp.le.s32.totalorder 2, %s29
      // Predicated region
      $region117: #{tpu_custom_call.1} parent=5 // pred_check
        %p2093 = pneg %p2092
      $region118: #{tpu_custom_call.1} parent=5 // pred_check_branch
        %2095 = sbr.rel (%p2093) target = $region120
      $region119: #{tpu_custom_call.1} parent=5 // pred_region
        %s2096 = ssub.s32 %s29, 2
        // Predicated region
        $region121: #{tpu_custom_call.1} parent=119 // pred_check
          %p2097 = pneg %p378
        $region122: #{tpu_custom_call.1} parent=119 // pred_check_branch
          %2099 = sbr.rel (%p2097) target = $region124
        $region123: #{tpu_custom_call.1} parent=119 // pred_region
          %s2100 = sand.u32 %s363, 1
          %s2101 = scalar_lea.sflag [#allocation4], %s2100
          %s2102 = sand.u32 %s363, 1
          %s2103 = scalar_lea.vmem [#allocation16], %s2102
          %2104 = dma.done %s2101, 16
        $region124: #{tpu_custom_call.1} parent=119 // pred_fallthru
          _
      $region120: #{tpu_custom_call.1} parent=5 // pred_fallthru
        _
    $region6: #{tpu_custom_call.1} parent=1 // loop_footer
      %s33 = sadd.s32 1, %s29
    $region7: #{tpu_custom_call.1} parent=1 // loop_footer_branch
      %28 = sbr.rel target = $region3
    $region8: #{tpu_custom_call.1} parent=1 // loop_exit
      _
    %2105 = vsyncpa [#allocation3], 1
    %s2106 = scalar_lea.sflag [#allocation3], 1
    %2107 = vsyncpa %s2106, 1
    %2108 = vsyncpa [#allocation6], 1
    %2109 = vsyncpa [#allocation9], 1
    %2110 = vsyncpa [#allocation12], 1
    %2111 = vsyncpa [#allocation15], 1
    %2112 = vsyncpa [#allocation4], 1
    %s2113 = scalar_lea.sflag [#allocation4], 1
    %2114 = vsyncpa %s2113, 1

</llo_original>
